<compile_context>
chip_gen: v5e
topology: v5e:2x2
jax: 0.10.0
libtpu: 0.0.40
codegen_flags: <defaults>
</compile_context>

<pallas_src>
import functools

import jax
import jax.numpy as jnp
from jax.experimental import pallas as pl
from jax.experimental.pallas import tpu as pltpu


def _round_up(x, m):
    return (x + m - 1) // m * m


# ----------------------------- Pallas kernels ------------------------------ #
def _conv_stats_kernel(w_ref, g_ref, bt_ref, p_ref, y_ref, scale_ref, shift_ref,
                       sum_ref, ssq_ref, *, inv_s):
    """Pass 1: conv tile (bf16 MXU, f32 acc) + per-channel stats accumulation.

    w_ref:     (Cp, Kp)     bf16 flattened conv weights
    g_ref:     (Cp, 1)      instance-norm gamma (f32)
    bt_ref:    (Cp, 1)      instance-norm beta  (f32)
    p_ref:     (1, Kp, TS)  bf16 im2col patches tile of batch element n
    y_ref:     (1, Cp, TS)  f32 conv output tile (lane-dense last dim)
    scale_ref: (1, Cp, 1)   f32 per-channel scale (written at last S tile)
    shift_ref: (1, Cp, 1)   f32 per-channel shift (written at last S tile)
    sum_ref, ssq_ref: (Cp, 1) f32 VMEM accumulators (persist across S tiles)
    """
    s = pl.program_id(1)

    @pl.when(s == 0)
    def _():
        sum_ref[...] = jnp.zeros_like(sum_ref)
        ssq_ref[...] = jnp.zeros_like(ssq_ref)

    # (Cp, Kp) @ (Kp, TS) -> (Cp, TS) on the MXU, f32 accumulation.
    y = jnp.dot(w_ref[...], p_ref[0], preferred_element_type=jnp.float32)
    # Conv bias intentionally omitted: a per-channel constant is removed exactly by
    # InstanceNorm's mean subtraction, and omitting it keeps zero-padded S columns
    # at exactly 0 so they add nothing to the statistics.
    y_ref[0] = y
    sum_ref[...] += jnp.sum(y, axis=1, keepdims=True)
    ssq_ref[...] += jnp.sum(y * y, axis=1, keepdims=True)

    @pl.when(s == pl.num_programs(1) - 1)
    def _():
        mean = sum_ref[...] * inv_s
        var = jnp.maximum(ssq_ref[...] * inv_s - mean * mean, 0.0)   # biased variance
        rstd = jax.lax.rsqrt(var + 1e-5)
        scale = g_ref[...] * rstd
        scale_ref[0] = scale
        shift_ref[0] = bt_ref[...] - mean * scale


def _norm_lrelu_kernel(scale_ref, shift_ref, y_ref, o_ref):
    """Pass 2: per-channel affine normalization + LeakyReLU(0.01)."""
    yn = y_ref[0] * scale_ref[0] + shift_ref[0]
    o_ref[0] = jnp.where(yn >= 0, yn, 0.01 * yn)


# ------------------------------ JAX glue ----------------------------------- #
def _im2col_3d(x, k, stride, pad):
    """x: (N, C, D, H, W) -> bf16 patches (N, C*k^3, S); K index = ci*k^3 + kidx.

    This matches the PyTorch weight reshape (C_out, C_in*k^3). The (N, C, k^3, Do,
    Ho, Wo) -> (N, K, S) reshape is contiguous, so no large transpose is emitted.
    """
    N, C, D, H, W = x.shape
    sd, sh, sw = stride
    Do = (D + 2 * pad - k) // sd + 1
    Ho = (H + 2 * pad - k) // sh + 1
    Wo = (W + 2 * pad - k) // sw + 1
    xp = jnp.pad(x.astype(jnp.bfloat16),
                 ((0, 0), (0, 0), (pad, pad), (pad, pad), (pad, pad)))
    cols = []
    for kd in range(k):
        for kh in range(k):
            for kw in range(k):
                cols.append(xp[:, :,
                               kd:kd + sd * Do:sd,
                               kh:kh + sh * Ho:sh,
                               kw:kw + sw * Wo:sw])        # (N, C, Do, Ho, Wo)
    p = jnp.stack(cols, axis=2)                            # (N, C, k^3, Do, Ho, Wo)
    p = p.reshape(N, C * k * k * k, Do * Ho * Wo)          # (N, K, S)
    return p, (Do, Ho, Wo)


def fused_conv_block(x, params, stride, k=3, pad=1, max_ts=512):
    """One ConvDropoutInsNormLRelu3d block via two fused Pallas passes."""
    N, Cin, _, _, _ = x.shape
    Cout = params["w"].shape[0]
    K = Cin * k * k * k

    patches, (Do, Ho, Wo) = _im2col_3d(x, k, stride, pad)
    S = Do * Ho * Wo

    Cp = _round_up(Cout, 8)             # sublane-aligned channels
    Kp = _round_up(K, 128)              # lane-aligned contraction dim
    ts = min(max_ts, _round_up(S, 128)) # S tile (multiple of 128)
    S_pad = _round_up(S, ts)
    n_s = S_pad // ts

    patches = jnp.pad(patches, ((0, 0), (0, Kp - K), (0, S_pad - S)))
    w = jnp.pad(params["w"].reshape(Cout, K),
                ((0, Cp - Cout), (0, Kp - K))).astype(jnp.bfloat16)
    gamma = jnp.pad(params["gamma"], (0, Cp - Cout)).reshape(Cp, 1).astype(jnp.float32)
    beta = jnp.pad(params["beta"], (0, Cp - Cout)).reshape(Cp, 1).astype(jnp.float32)

    # Pass 1: conv tiles + per-channel scale/shift. Per-step VMEM (double-buffered
    # bf16 patch tile + f32 y tile + resident weights) stays at a few MiB for
    # ts<=512 even at realistic SANet sizes, well under default scoped limits.
    y, scale, shift = pl.pallas_call(
        functools.partial(_conv_stats_kernel, inv_s=1.0 / S),
        out_shape=(
            jax.ShapeDtypeStruct((N, Cp, S_pad), jnp.float32),
            jax.ShapeDtypeStruct((N, Cp, 1), jnp.float32),
            jax.ShapeDtypeStruct((N, Cp, 1), jnp.float32),
        ),
        grid=(N, n_s),
        in_specs=[
            pl.BlockSpec((Cp, Kp), lambda n, s: (0, 0)),
            pl.BlockSpec((Cp, 1), lambda n, s: (0, 0)),
            pl.BlockSpec((Cp, 1), lambda n, s: (0, 0)),
            pl.BlockSpec((1, Kp, ts), lambda n, s: (n, 0, s)),
        ],
        out_specs=(
            pl.BlockSpec((1, Cp, ts), lambda n, s: (n, 0, s)),
            pl.BlockSpec((1, Cp, 1), lambda n, s: (n, 0, 0)),
            pl.BlockSpec((1, Cp, 1), lambda n, s: (n, 0, 0)),
        ),
        scratch_shapes=[pltpu.VMEM((Cp, 1), jnp.float32),
                        pltpu.VMEM((Cp, 1), jnp.float32)],
        compiler_params=pltpu.CompilerParams(
            dimension_semantics=("parallel", "arbitrary")),
    )(w, gamma, beta, patches)

    # Pass 2: normalize + LeakyReLU; output aliases y's HBM buffer.
    out = pl.pallas_call(
        _norm_lrelu_kernel,
        out_shape=jax.ShapeDtypeStruct((N, Cp, S_pad), jnp.float32),
        grid=(N, n_s),
        in_specs=[
            pl.BlockSpec((1, Cp, 1), lambda n, s: (n, 0, 0)),
            pl.BlockSpec((1, Cp, 1), lambda n, s: (n, 0, 0)),
            pl.BlockSpec((1, Cp, ts), lambda n, s: (n, 0, s)),
        ],
        out_specs=pl.BlockSpec((1, Cp, ts), lambda n, s: (n, 0, s)),
        input_output_aliases={2: 0},
        compiler_params=pltpu.CompilerParams(
            dimension_semantics=("parallel", "parallel")),
    )(scale, shift, y)

    # (N, Cp, S_pad) -> (N, Cout, Do, Ho, Wo); layout is already NCDHW-flat, so this
    # is only a pad-drop + contiguous reshape (no transpose between blocks).
    return out[:, :Cout, :S].reshape(N, Cout, Do, Ho, Wo)


def stack_encoder(x, params_list):
    """StackEncoder forward: first block stride (2,2,2), rest stride (1,1,1)."""
    y = fused_conv_block(x, params_list[0], stride=(2, 2, 2))
    for p in params_list[1:]:
        y = fused_conv_block(y, p, stride=(1, 1, 1))
    return y


# --------------------------- parameter init -------------------------------- #
def init_block_params(key, cin, cout, k=3):
    k1, k2, k3, k4 = jax.random.split(key, 4)
    fan_in = cin * k * k * k
    return dict(
        w=jax.random.normal(k1, (cout, cin, k, k, k), jnp.float32) * (1.0 / fan_in) ** 0.5,
        b=0.05 * jax.random.normal(k2, (cout,), jnp.float32),
        gamma=1.0 + 0.1 * jax.random.normal(k3, (cout,), jnp.float32),
        beta=0.1 * jax.random.normal(k4, (cout,), jnp.float32),
    )


# ------------------------- pure-JAX reference ------------------------------ #
def ref_block(x, p, stride, pad=1):
    # Reference applies the same bf16 operand rounding as the kernel's MXU feed,
    # with f32 accumulation; norm / LeakyReLU math stays in f32.
    y = jax.lax.conv_general_dilated(
        x.astype(jnp.bfloat16), p["w"].astype(jnp.bfloat16),
        window_strides=stride, padding=[(pad, pad)] * 3,
        dimension_numbers=("NCDHW", "OIDHW", "NCDHW"),
        preferred_element_type=jnp.float32)
    y = y + p["b"][None, :, None, None, None]   # cancels in InstanceNorm
    mean = y.mean(axis=(2, 3, 4), keepdims=True)
    var = ((y - mean) ** 2).mean(axis=(2, 3, 4), keepdims=True)
    yn = (y - mean) / jnp.sqrt(var + 1e-5)
    yn = yn * p["gamma"][None, :, None, None, None] + p["beta"][None, :, None, None, None]
    return jnp.where(yn >= 0, yn, 0.01 * yn)


def stack_encoder_ref(x, params_list):
    y = ref_block(x, params_list[0], (2, 2, 2))
    for p in params_list[1:]:
        y = ref_block(y, p, (1, 1, 1))
    return y


# --------------------------------- main ------------------------------------ #
if __name__ == "__main__":
    key = jax.random.PRNGKey(0)
    kx, kb0, kb1 = jax.random.split(key, 3)

    # Small shapes consistent with the module: NCDHW 3D volumes.
    N, x_channels, y_channels, D = 2, 4, 8, 8
    n_blocks = 2

    x = jax.random.normal(kx, (N, x_channels, D, D, D), jnp.float32)
    params = [init_block_params(kb0, x_channels, y_channels)]
    params += [init_block_params(kb1, y_channels, y_channels) for _ in range(n_blocks - 1)]

    encoder = jax.jit(stack_encoder)
    y = jax.block_until_ready(encoder(x, params))

    y_ref = jax.block_until_ready(stack_encoder_ref(x, params))
    assert y.shape == (N, y_channels, D // 2, D // 2, D // 2), y.shape
    max_err = float(jnp.max(jnp.abs(y - y_ref)))
    assert jnp.allclose(y, y_ref, atol=1e-2, rtol=1e-2), max_err

    print("KERNEL_OK")
</pallas_src>

<mosaic_0001>
module attributes {stable_mosaic.version = 11 : i64} {
  func.func @_norm_lrelu_kernel(%arg0: i32, %arg1: i32, %arg2: memref<1x8x1xf32, #tpu.memory_space<vmem>>, %arg3: memref<1x8x1xf32, #tpu.memory_space<vmem>>, %arg4: memref<1x8x128xf32, #tpu.memory_space<vmem>>, %arg5: memref<1x8x128xf32, #tpu.memory_space<vmem>>) attributes {dimension_semantics = [#tpu.dimension_semantics<parallel>, #tpu.dimension_semantics<parallel>], iteration_bounds = array<i64: 2, 1>, scalar_prefetch = 0 : i64, scratch_operands = 0 : i64, tpu.core_type = #tpu.core_type<tc>, window_params = [{transform_indices = @transform_0, window_bounds = array<i64: 1, 8, 1>}, {transform_indices = @transform_1, window_bounds = array<i64: 1, 8, 1>}, {transform_indices = @transform_2, window_bounds = array<i64: 1, 8, 128>}, {transform_indices = @transform_3, window_bounds = array<i64: 1, 8, 128>}]} {
    %c0 = arith.constant 0 : index
    %c0_0 = arith.constant 0 : index
    %c0_1 = arith.constant 0 : index
    %0 = vector.load %arg4[%c0, %c0_0, %c0_1] : memref<1x8x128xf32, #tpu.memory_space<vmem>>, vector<1x8x128xf32>
    %1 = vector.shape_cast %0 : vector<1x8x128xf32> to vector<8x128xf32>
    %c0_2 = arith.constant 0 : index
    %c0_3 = arith.constant 0 : index
    %c0_4 = arith.constant 0 : index
    %2 = vector.load %arg2[%c0_2, %c0_3, %c0_4] : memref<1x8x1xf32, #tpu.memory_space<vmem>>, vector<1x8x1xf32>
    %3 = vector.shape_cast %2 : vector<1x8x1xf32> to vector<8x1xf32>
    %4 = vector.broadcast %3 : vector<8x1xf32> to vector<8x128xf32>
    %5 = arith.mulf %1, %4 : vector<8x128xf32>
    %c0_5 = arith.constant 0 : index
    %c0_6 = arith.constant 0 : index
    %c0_7 = arith.constant 0 : index
    %6 = vector.load %arg3[%c0_5, %c0_6, %c0_7] : memref<1x8x1xf32, #tpu.memory_space<vmem>>, vector<1x8x1xf32>
    %7 = vector.shape_cast %6 : vector<1x8x1xf32> to vector<8x1xf32>
    %8 = vector.broadcast %7 : vector<8x1xf32> to vector<8x128xf32>
    %9 = arith.addf %5, %8 : vector<8x128xf32>
    %cst = arith.constant 0.000000e+00 : f32
    %10 = vector.broadcast %cst : f32 to vector<8x128xf32>
    %11 = arith.cmpf oge, %9, %10 : vector<8x128xf32>
    %cst_8 = arith.constant 0.00999999977 : f32
    %12 = vector.broadcast %cst_8 : f32 to vector<8x128xf32>
    %13 = arith.mulf %12, %9 : vector<8x128xf32>
    %14 = arith.select %11, %9, %13 : vector<8x128xi1>, vector<8x128xf32>
    %c0_9 = arith.constant 0 : index
    %c0_10 = arith.constant 0 : index
    %c0_11 = arith.constant 0 : index
    %15 = vector.load %arg5[%c0_9, %c0_10, %c0_11] : memref<1x8x128xf32, #tpu.memory_space<vmem>>, vector<1x8x128xf32>
    %16 = vector.shape_cast %15 : vector<1x8x128xf32> to vector<8x128xf32>
    %17 = vector.shape_cast %14 : vector<8x128xf32> to vector<1x8x128xf32>
    tpu.vector_store %arg5[%c0_9, %c0_10, %c0_11], %17 {strides = array<i32>} : memref<1x8x128xf32, #tpu.memory_space<vmem>>, vector<1x8x128xf32>,
    return
  }
  func.func @transform_0(%arg0: i32, %arg1: i32) -> (i32, i32, i32) {
    %c0_i32 = arith.constant 0 : i32
    %c0_i32_0 = arith.constant 0 : i32
    %c0_i32_1 = arith.constant 0 : i32
    return %arg0, %c0_i32, %c0_i32_0 : i32, i32, i32
  }
  func.func @transform_1(%arg0: i32, %arg1: i32) -> (i32, i32, i32) {
    %c0_i32 = arith.constant 0 : i32
    %c0_i32_0 = arith.constant 0 : i32
    %c0_i32_1 = arith.constant 0 : i32
    return %arg0, %c0_i32, %c0_i32_0 : i32, i32, i32
  }
  func.func @transform_2(%arg0: i32, %arg1: i32) -> (i32, i32, i32) {
    %c0_i32 = arith.constant 0 : i32
    %c0_i32_0 = arith.constant 0 : i32
    return %arg0, %c0_i32, %arg1 : i32, i32, i32
  }
  func.func @transform_3(%arg0: i32, %arg1: i32) -> (i32, i32, i32) {
    %c0_i32 = arith.constant 0 : i32
    %c0_i32_0 = arith.constant 0 : i32
    return %arg0, %c0_i32, %arg1 : i32, i32, i32
  }
}

module attributes {stable_mosaic.version = 11 : i64} {
  func.func @_conv_stats_kernel(%arg0: i32, %arg1: i32, %arg2: memref<8x128xbf16, #tpu.memory_space<vmem>>, %arg3: memref<8x1xf32, #tpu.memory_space<vmem>>, %arg4: memref<8x1xf32, #tpu.memory_space<vmem>>, %arg5: memref<1x128x128xbf16, #tpu.memory_space<vmem>>, %arg6: memref<1x8x128xf32, #tpu.memory_space<vmem>>, %arg7: memref<1x8x1xf32, #tpu.memory_space<vmem>>, %arg8: memref<1x8x1xf32, #tpu.memory_space<vmem>>, %arg9: memref<8x1xf32, #tpu.memory_space<vmem>>, %arg10: memref<8x1xf32, #tpu.memory_space<vmem>>) attributes {dimension_semantics = [#tpu.dimension_semantics<parallel>, #tpu.dimension_semantics<arbitrary>], iteration_bounds = array<i64: 2, 1>, scalar_prefetch = 0 : i64, scratch_operands = 2 : i64, tpu.core_type = #tpu.core_type<tc>, window_params = [{pipeline_mode = #tpu.pipeline_mode<synchronous>, transform_indices = @transform_0, window_bounds = array<i64: 8, 128>}, {pipeline_mode = #tpu.pipeline_mode<synchronous>, transform_indices = @transform_1, window_bounds = array<i64: 8, 1>}, {pipeline_mode = #tpu.pipeline_mode<synchronous>, transform_indices = @transform_2, window_bounds = array<i64: 8, 1>}, {transform_indices = @transform_3, window_bounds = array<i64: 1, 128, 128>}, {transform_indices = @transform_4, window_bounds = array<i64: 1, 8, 128>}, {transform_indices = @transform_5, window_bounds = array<i64: 1, 8, 1>}, {transform_indices = @transform_6, window_bounds = array<i64: 1, 8, 1>}]} {
    %c0_i32 = arith.constant 0 : i32
    %0 = arith.cmpi eq, %arg1, %c0_i32 : i32
    %1 = arith.extui %0 : i1 to i32
    %c0_i32_0 = arith.constant 0 : i32
    %2 = arith.cmpi ne, %1, %c0_i32_0 : i32
    scf.if %2 {
      %cst_20 = arith.constant 0.000000e+00 : f32
      %24 = vector.broadcast %cst_20 : f32 to vector<8x1xf32>
      %c0_21 = arith.constant 0 : index
      %c0_22 = arith.constant 0 : index
      %25 = vector.load %arg9[%c0_21, %c0_22] : memref<8x1xf32, #tpu.memory_space<vmem>>, vector<8x1xf32>
      tpu.vector_store %arg9[%c0_21, %c0_22], %24 {strides = array<i32>} : memref<8x1xf32, #tpu.memory_space<vmem>>, vector<8x1xf32>,
      %cst_23 = arith.constant 0.000000e+00 : f32
      %26 = vector.broadcast %cst_23 : f32 to vector<8x1xf32>
      %c0_24 = arith.constant 0 : index
      %c0_25 = arith.constant 0 : index
      %27 = vector.load %arg10[%c0_24, %c0_25] : memref<8x1xf32, #tpu.memory_space<vmem>>, vector<8x1xf32>
      tpu.vector_store %arg10[%c0_24, %c0_25], %26 {strides = array<i32>} : memref<8x1xf32, #tpu.memory_space<vmem>>, vector<8x1xf32>,
    } else {
    }
    %c0 = arith.constant 0 : index
    %c0_1 = arith.constant 0 : index
    %3 = vector.load %arg2[%c0, %c0_1] : memref<8x128xbf16, #tpu.memory_space<vmem>>, vector<8x128xbf16>
    %c0_2 = arith.constant 0 : index
    %c0_3 = arith.constant 0 : index
    %c0_4 = arith.constant 0 : index
    %4 = vector.load %arg5[%c0_2, %c0_3, %c0_4] : memref<1x128x128xbf16, #tpu.memory_space<vmem>>, vector<1x128x128xbf16>
    %5 = vector.shape_cast %4 : vector<1x128x128xbf16> to vector<128x128xbf16>
    %cst = arith.constant dense<0.000000e+00> : vector<8x128xf32>
    %6 = tpu.matmul %3, %5, %cst {dimension_numbers = #tpu.dot_dimension_numbers<[1], [0], [0], [1], [0, 0, 1, 1], [], []>} : vector<8x128xbf16>, vector<128x128xbf16>, vector<8x128xf32> -> vector<8x128xf32>
    %c0_5 = arith.constant 0 : index
    %c0_6 = arith.constant 0 : index
    %c0_7 = arith.constant 0 : index
    %7 = vector.load %arg6[%c0_5, %c0_6, %c0_7] : memref<1x8x128xf32, #tpu.memory_space<vmem>>, vector<1x8x128xf32>
    %8 = vector.shape_cast %7 : vector<1x8x128xf32> to vector<8x128xf32>
    %9 = vector.shape_cast %6 : vector<8x128xf32> to vector<1x8x128xf32>
    tpu.vector_store %arg6[%c0_5, %c0_6, %c0_7], %9 {strides = array<i32>} : memref<1x8x128xf32, #tpu.memory_space<vmem>>, vector<1x8x128xf32>,
    %c0_8 = arith.constant 0 : index
    %c0_9 = arith.constant 0 : index
    %10 = vector.load %arg9[%c0_8, %c0_9] : memref<8x1xf32, #tpu.memory_space<vmem>>, vector<8x1xf32>
    %cst_10 = arith.constant dense<0.000000e+00> : vector<8xf32>
    %11 = vector.multi_reduction <add>, %6, %cst_10 [1] : vector<8x128xf32> to vector<8xf32>
    %12 = vector.shape_cast %11 : vector<8xf32> to vector<8x1xf32>
    %13 = arith.addf %10, %12 : vector<8x1xf32>
    %c0_11 = arith.constant 0 : index
    %c0_12 = arith.constant 0 : index
    %14 = vector.load %arg9[%c0_11, %c0_12] : memref<8x1xf32, #tpu.memory_space<vmem>>, vector<8x1xf32>
    tpu.vector_store %arg9[%c0_11, %c0_12], %13 {strides = array<i32>} : memref<8x1xf32, #tpu.memory_space<vmem>>, vector<8x1xf32>,
    %c0_13 = arith.constant 0 : index
    %c0_14 = arith.constant 0 : index
    %15 = vector.load %arg10[%c0_13, %c0_14] : memref<8x1xf32, #tpu.memory_space<vmem>>, vector<8x1xf32>
    %16 = arith.mulf %6, %6 : vector<8x128xf32>
    %cst_15 = arith.constant dense<0.000000e+00> : vector<8xf32>
    %17 = vector.multi_reduction <add>, %16, %cst_15 [1] : vector<8x128xf32> to vector<8xf32>
    %18 = vector.shape_cast %17 : vector<8xf32> to vector<8x1xf32>
    %19 = arith.addf %15, %18 : vector<8x1xf32>
    %c0_16 = arith.constant 0 : index
    %c0_17 = arith.constant 0 : index
    %20 = vector.load %arg10[%c0_16, %c0_17] : memref<8x1xf32, #tpu.memory_space<vmem>>, vector<8x1xf32>
    tpu.vector_store %arg10[%c0_16, %c0_17], %19 {strides = array<i32>} : memref<8x1xf32, #tpu.memory_space<vmem>>, vector<8x1xf32>,
    %c0_i32_18 = arith.constant 0 : i32
    %21 = arith.cmpi eq, %arg1, %c0_i32_18 : i32
    %22 = arith.extui %21 : i1 to i32
    %c0_i32_19 = arith.constant 0 : i32
    %23 = arith.cmpi ne, %22, %c0_i32_19 : i32
    scf.if %23 {
      %c0_20 = arith.constant 0 : index
      %c0_21 = arith.constant 0 : index
      %24 = vector.load %arg9[%c0_20, %c0_21] : memref<8x1xf32, #tpu.memory_space<vmem>>, vector<8x1xf32>
      %cst_22 = arith.constant 1.562500e-02 : f32
      %25 = vector.broadcast %cst_22 : f32 to vector<8x1xf32>
      %26 = arith.mulf %24, %25 : vector<8x1xf32>
      %c0_23 = arith.constant 0 : index
      %c0_24 = arith.constant 0 : index
      %27 = vector.load %arg10[%c0_23, %c0_24] : memref<8x1xf32, #tpu.memory_space<vmem>>, vector<8x1xf32>
      %cst_25 = arith.constant 1.562500e-02 : f32
      %28 = vector.broadcast %cst_25 : f32 to vector<8x1xf32>
      %29 = arith.mulf %27, %28 : vector<8x1xf32>
      %30 = arith.mulf %26, %26 : vector<8x1xf32>
      %31 = arith.subf %29, %30 : vector<8x1xf32>
      %cst_26 = arith.constant 0.000000e+00 : f32
      %32 = vector.broadcast %cst_26 : f32 to vector<8x1xf32>
      %33 = arith.maximumf %31, %32 : vector<8x1xf32>
      %cst_27 = arith.constant 9.99999974E-6 : f32
      %34 = vector.broadcast %cst_27 : f32 to vector<8x1xf32>
      %35 = arith.addf %33, %34 : vector<8x1xf32>
      %36 = math.rsqrt %35 : vector<8x1xf32>
      %c0_28 = arith.constant 0 : index
      %c0_29 = arith.constant 0 : index
      %37 = vector.load %arg3[%c0_28, %c0_29] : memref<8x1xf32, #tpu.memory_space<vmem>>, vector<8x1xf32>
      %38 = arith.mulf %37, %36 : vector<8x1xf32>
      %c0_30 = arith.constant 0 : index
      %c0_31 = arith.constant 0 : index
      %c0_32 = arith.constant 0 : index
      %39 = vector.load %arg7[%c0_30, %c0_31, %c0_32] : memref<1x8x1xf32, #tpu.memory_space<vmem>>, vector<1x8x1xf32>
      %40 = vector.shape_cast %39 : vector<1x8x1xf32> to vector<8x1xf32>
      %41 = vector.shape_cast %38 : vector<8x1xf32> to vector<1x8x1xf32>
      tpu.vector_store %arg7[%c0_30, %c0_31, %c0_32], %41 {strides = array<i32>} : memref<1x8x1xf32, #tpu.memory_space<vmem>>, vector<1x8x1xf32>,
      %c0_33 = arith.constant 0 : index
      %c0_34 = arith.constant 0 : index
      %42 = vector.load %arg4[%c0_33, %c0_34] : memref<8x1xf32, #tpu.memory_space<vmem>>, vector<8x1xf32>
      %43 = arith.mulf %26, %38 : vector<8x1xf32>
      %44 = arith.subf %42, %43 : vector<8x1xf32>
      %c0_35 = arith.constant 0 : index
      %c0_36 = arith.constant 0 : index
      %c0_37 = arith.constant 0 : index
      %45 = vector.load %arg8[%c0_35, %c0_36, %c0_37] : memref<1x8x1xf32, #tpu.memory_space<vmem>>, vector<1x8x1xf32>
      %46 = vector.shape_cast %45 : vector<1x8x1xf32> to vector<8x1xf32>
      %47 = vector.shape_cast %44 : vector<8x1xf32> to vector<1x8x1xf32>
      tpu.vector_store %arg8[%c0_35, %c0_36, %c0_37], %47 {strides = array<i32>} : memref<1x8x1xf32, #tpu.memory_space<vmem>>, vector<1x8x1xf32>,
    } else {
    }
    return
  }
  func.func @transform_0(%arg0: i32, %arg1: i32) -> (i32, i32) {
    %c0_i32 = arith.constant 0 : i32
    %c0_i32_0 = arith.constant 0 : i32
    %c0_i32_1 = arith.constant 0 : i32
    return %c0_i32, %c0_i32_0 : i32, i32
  }
  func.func @transform_1(%arg0: i32, %arg1: i32) -> (i32, i32) {
    %c0_i32 = arith.constant 0 : i32
    %c0_i32_0 = arith.constant 0 : i32
    %c0_i32_1 = arith.constant 0 : i32
    return %c0_i32, %c0_i32_0 : i32, i32
  }
  func.func @transform_2(%arg0: i32, %arg1: i32) -> (i32, i32) {
    %c0_i32 = arith.constant 0 : i32
    %c0_i32_0 = arith.constant 0 : i32
    %c0_i32_1 = arith.constant 0 : i32
    return %c0_i32, %c0_i32_0 : i32, i32
  }
  func.func @transform_3(%arg0: i32, %arg1: i32) -> (i32, i32, i32) {
    %c0_i32 = arith.constant 0 : i32
    %c0_i32_0 = arith.constant 0 : i32
    return %arg0, %c0_i32, %arg1 : i32, i32, i32
  }
  func.func @transform_4(%arg0: i32, %arg1: i32) -> (i32, i32, i32) {
    %c0_i32 = arith.constant 0 : i32
    %c0_i32_0 = arith.constant 0 : i32
    return %arg0, %c0_i32, %arg1 : i32, i32, i32
  }
  func.func @transform_5(%arg0: i32, %arg1: i32) -> (i32, i32, i32) {
    %c0_i32 = arith.constant 0 : i32
    %c0_i32_0 = arith.constant 0 : i32
    %c0_i32_1 = arith.constant 0 : i32
    return %arg0, %c0_i32, %c0_i32_0 : i32, i32, i32
  }
  func.func @transform_6(%arg0: i32, %arg1: i32) -> (i32, i32, i32) {
    %c0_i32 = arith.constant 0 : i32
    %c0_i32_0 = arith.constant 0 : i32
    %c0_i32_1 = arith.constant 0 : i32
    return %arg0, %c0_i32, %c0_i32_0 : i32, i32, i32
  }
}

module attributes {stable_mosaic.version = 11 : i64} {
  func.func @_conv_stats_kernel(%arg0: i32, %arg1: i32, %arg2: memref<8x256xbf16, #tpu.memory_space<vmem>>, %arg3: memref<8x1xf32, #tpu.memory_space<vmem>>, %arg4: memref<8x1xf32, #tpu.memory_space<vmem>>, %arg5: memref<1x256x128xbf16, #tpu.memory_space<vmem>>, %arg6: memref<1x8x128xf32, #tpu.memory_space<vmem>>, %arg7: memref<1x8x1xf32, #tpu.memory_space<vmem>>, %arg8: memref<1x8x1xf32, #tpu.memory_space<vmem>>, %arg9: memref<8x1xf32, #tpu.memory_space<vmem>>, %arg10: memref<8x1xf32, #tpu.memory_space<vmem>>) attributes {dimension_semantics = [#tpu.dimension_semantics<parallel>, #tpu.dimension_semantics<arbitrary>], iteration_bounds = array<i64: 2, 1>, scalar_prefetch = 0 : i64, scratch_operands = 2 : i64, tpu.core_type = #tpu.core_type<tc>, window_params = [{pipeline_mode = #tpu.pipeline_mode<synchronous>, transform_indices = @transform_0, window_bounds = array<i64: 8, 256>}, {pipeline_mode = #tpu.pipeline_mode<synchronous>, transform_indices = @transform_1, window_bounds = array<i64: 8, 1>}, {pipeline_mode = #tpu.pipeline_mode<synchronous>, transform_indices = @transform_2, window_bounds = array<i64: 8, 1>}, {transform_indices = @transform_3, window_bounds = array<i64: 1, 256, 128>}, {transform_indices = @transform_4, window_bounds = array<i64: 1, 8, 128>}, {transform_indices = @transform_5, window_bounds = array<i64: 1, 8, 1>}, {transform_indices = @transform_6, window_bounds = array<i64: 1, 8, 1>}]} {
    %c0_i32 = arith.constant 0 : i32
    %0 = arith.cmpi eq, %arg1, %c0_i32 : i32
    %1 = arith.extui %0 : i1 to i32
    %c0_i32_0 = arith.constant 0 : i32
    %2 = arith.cmpi ne, %1, %c0_i32_0 : i32
    scf.if %2 {
      %cst_20 = arith.constant 0.000000e+00 : f32
      %24 = vector.broadcast %cst_20 : f32 to vector<8x1xf32>
      %c0_21 = arith.constant 0 : index
      %c0_22 = arith.constant 0 : index
      %25 = vector.load %arg9[%c0_21, %c0_22] : memref<8x1xf32, #tpu.memory_space<vmem>>, vector<8x1xf32>
      tpu.vector_store %arg9[%c0_21, %c0_22], %24 {strides = array<i32>} : memref<8x1xf32, #tpu.memory_space<vmem>>, vector<8x1xf32>,
      %cst_23 = arith.constant 0.000000e+00 : f32
      %26 = vector.broadcast %cst_23 : f32 to vector<8x1xf32>
      %c0_24 = arith.constant 0 : index
      %c0_25 = arith.constant 0 : index
      %27 = vector.load %arg10[%c0_24, %c0_25] : memref<8x1xf32, #tpu.memory_space<vmem>>, vector<8x1xf32>
      tpu.vector_store %arg10[%c0_24, %c0_25], %26 {strides = array<i32>} : memref<8x1xf32, #tpu.memory_space<vmem>>, vector<8x1xf32>,
    } else {
    }
    %c0 = arith.constant 0 : index
    %c0_1 = arith.constant 0 : index
    %3 = vector.load %arg2[%c0, %c0_1] : memref<8x256xbf16, #tpu.memory_space<vmem>>, vector<8x256xbf16>
    %c0_2 = arith.constant 0 : index
    %c0_3 = arith.constant 0 : index
    %c0_4 = arith.constant 0 : index
    %4 = vector.load %arg5[%c0_2, %c0_3, %c0_4] : memref<1x256x128xbf16, #tpu.memory_space<vmem>>, vector<1x256x128xbf16>
    %5 = vector.shape_cast %4 : vector<1x256x128xbf16> to vector<256x128xbf16>
    %cst = arith.constant dense<0.000000e+00> : vector<8x128xf32>
    %6 = tpu.matmul %3, %5, %cst {dimension_numbers = #tpu.dot_dimension_numbers<[1], [0], [0], [1], [0, 0, 1, 1], [], []>} : vector<8x256xbf16>, vector<256x128xbf16>, vector<8x128xf32> -> vector<8x128xf32>
    %c0_5 = arith.constant 0 : index
    %c0_6 = arith.constant 0 : index
    %c0_7 = arith.constant 0 : index
    %7 = vector.load %arg6[%c0_5, %c0_6, %c0_7] : memref<1x8x128xf32, #tpu.memory_space<vmem>>, vector<1x8x128xf32>
    %8 = vector.shape_cast %7 : vector<1x8x128xf32> to vector<8x128xf32>
    %9 = vector.shape_cast %6 : vector<8x128xf32> to vector<1x8x128xf32>
    tpu.vector_store %arg6[%c0_5, %c0_6, %c0_7], %9 {strides = array<i32>} : memref<1x8x128xf32, #tpu.memory_space<vmem>>, vector<1x8x128xf32>,
    %c0_8 = arith.constant 0 : index
    %c0_9 = arith.constant 0 : index
    %10 = vector.load %arg9[%c0_8, %c0_9] : memref<8x1xf32, #tpu.memory_space<vmem>>, vector<8x1xf32>
    %cst_10 = arith.constant dense<0.000000e+00> : vector<8xf32>
    %11 = vector.multi_reduction <add>, %6, %cst_10 [1] : vector<8x128xf32> to vector<8xf32>
    %12 = vector.shape_cast %11 : vector<8xf32> to vector<8x1xf32>
    %13 = arith.addf %10, %12 : vector<8x1xf32>
    %c0_11 = arith.constant 0 : index
    %c0_12 = arith.constant 0 : index
    %14 = vector.load %arg9[%c0_11, %c0_12] : memref<8x1xf32, #tpu.memory_space<vmem>>, vector<8x1xf32>
    tpu.vector_store %arg9[%c0_11, %c0_12], %13 {strides = array<i32>} : memref<8x1xf32, #tpu.memory_space<vmem>>, vector<8x1xf32>,
    %c0_13 = arith.constant 0 : index
    %c0_14 = arith.constant 0 : index
    %15 = vector.load %arg10[%c0_13, %c0_14] : memref<8x1xf32, #tpu.memory_space<vmem>>, vector<8x1xf32>
    %16 = arith.mulf %6, %6 : vector<8x128xf32>
    %cst_15 = arith.constant dense<0.000000e+00> : vector<8xf32>
    %17 = vector.multi_reduction <add>, %16, %cst_15 [1] : vector<8x128xf32> to vector<8xf32>
    %18 = vector.shape_cast %17 : vector<8xf32> to vector<8x1xf32>
    %19 = arith.addf %15, %18 : vector<8x1xf32>
    %c0_16 = arith.constant 0 : index
    %c0_17 = arith.constant 0 : index
    %20 = vector.load %arg10[%c0_16, %c0_17] : memref<8x1xf32, #tpu.memory_space<vmem>>, vector<8x1xf32>
    tpu.vector_store %arg10[%c0_16, %c0_17], %19 {strides = array<i32>} : memref<8x1xf32, #tpu.memory_space<vmem>>, vector<8x1xf32>,
    %c0_i32_18 = arith.constant 0 : i32
    %21 = arith.cmpi eq, %arg1, %c0_i32_18 : i32
    %22 = arith.extui %21 : i1 to i32
    %c0_i32_19 = arith.constant 0 : i32
    %23 = arith.cmpi ne, %22, %c0_i32_19 : i32
    scf.if %23 {
      %c0_20 = arith.constant 0 : index
      %c0_21 = arith.constant 0 : index
      %24 = vector.load %arg9[%c0_20, %c0_21] : memref<8x1xf32, #tpu.memory_space<vmem>>, vector<8x1xf32>
      %cst_22 = arith.constant 1.562500e-02 : f32
      %25 = vector.broadcast %cst_22 : f32 to vector<8x1xf32>
      %26 = arith.mulf %24, %25 : vector<8x1xf32>
      %c0_23 = arith.constant 0 : index
      %c0_24 = arith.constant 0 : index
      %27 = vector.load %arg10[%c0_23, %c0_24] : memref<8x1xf32, #tpu.memory_space<vmem>>, vector<8x1xf32>
      %cst_25 = arith.constant 1.562500e-02 : f32
      %28 = vector.broadcast %cst_25 : f32 to vector<8x1xf32>
      %29 = arith.mulf %27, %28 : vector<8x1xf32>
      %30 = arith.mulf %26, %26 : vector<8x1xf32>
      %31 = arith.subf %29, %30 : vector<8x1xf32>
      %cst_26 = arith.constant 0.000000e+00 : f32
      %32 = vector.broadcast %cst_26 : f32 to vector<8x1xf32>
      %33 = arith.maximumf %31, %32 : vector<8x1xf32>
      %cst_27 = arith.constant 9.99999974E-6 : f32
      %34 = vector.broadcast %cst_27 : f32 to vector<8x1xf32>
      %35 = arith.addf %33, %34 : vector<8x1xf32>
      %36 = math.rsqrt %35 : vector<8x1xf32>
      %c0_28 = arith.constant 0 : index
      %c0_29 = arith.constant 0 : index
      %37 = vector.load %arg3[%c0_28, %c0_29] : memref<8x1xf32, #tpu.memory_space<vmem>>, vector<8x1xf32>
      %38 = arith.mulf %37, %36 : vector<8x1xf32>
      %c0_30 = arith.constant 0 : index
      %c0_31 = arith.constant 0 : index
      %c0_32 = arith.constant 0 : index
      %39 = vector.load %arg7[%c0_30, %c0_31, %c0_32] : memref<1x8x1xf32, #tpu.memory_space<vmem>>, vector<1x8x1xf32>
      %40 = vector.shape_cast %39 : vector<1x8x1xf32> to vector<8x1xf32>
      %41 = vector.shape_cast %38 : vector<8x1xf32> to vector<1x8x1xf32>
      tpu.vector_store %arg7[%c0_30, %c0_31, %c0_32], %41 {strides = array<i32>} : memref<1x8x1xf32, #tpu.memory_space<vmem>>, vector<1x8x1xf32>,
      %c0_33 = arith.constant 0 : index
      %c0_34 = arith.constant 0 : index
      %42 = vector.load %arg4[%c0_33, %c0_34] : memref<8x1xf32, #tpu.memory_space<vmem>>, vector<8x1xf32>
      %43 = arith.mulf %26, %38 : vector<8x1xf32>
      %44 = arith.subf %42, %43 : vector<8x1xf32>
      %c0_35 = arith.constant 0 : index
      %c0_36 = arith.constant 0 : index
      %c0_37 = arith.constant 0 : index
      %45 = vector.load %arg8[%c0_35, %c0_36, %c0_37] : memref<1x8x1xf32, #tpu.memory_space<vmem>>, vector<1x8x1xf32>
      %46 = vector.shape_cast %45 : vector<1x8x1xf32> to vector<8x1xf32>
      %47 = vector.shape_cast %44 : vector<8x1xf32> to vector<1x8x1xf32>
      tpu.vector_store %arg8[%c0_35, %c0_36, %c0_37], %47 {strides = array<i32>} : memref<1x8x1xf32, #tpu.memory_space<vmem>>, vector<1x8x1xf32>,
    } else {
    }
    return
  }
  func.func @transform_0(%arg0: i32, %arg1: i32) -> (i32, i32) {
    %c0_i32 = arith.constant 0 : i32
    %c0_i32_0 = arith.constant 0 : i32
    %c0_i32_1 = arith.constant 0 : i32
    return %c0_i32, %c0_i32_0 : i32, i32
  }
  func.func @transform_1(%arg0: i32, %arg1: i32) -> (i32, i32) {
    %c0_i32 = arith.constant 0 : i32
    %c0_i32_0 = arith.constant 0 : i32
    %c0_i32_1 = arith.constant 0 : i32
    return %c0_i32, %c0_i32_0 : i32, i32
  }
  func.func @transform_2(%arg0: i32, %arg1: i32) -> (i32, i32) {
    %c0_i32 = arith.constant 0 : i32
    %c0_i32_0 = arith.constant 0 : i32
    %c0_i32_1 = arith.constant 0 : i32
    return %c0_i32, %c0_i32_0 : i32, i32
  }
  func.func @transform_3(%arg0: i32, %arg1: i32) -> (i32, i32, i32) {
    %c0_i32 = arith.constant 0 : i32
    %c0_i32_0 = arith.constant 0 : i32
    return %arg0, %c0_i32, %arg1 : i32, i32, i32
  }
  func.func @transform_4(%arg0: i32, %arg1: i32) -> (i32, i32, i32) {
    %c0_i32 = arith.constant 0 : i32
    %c0_i32_0 = arith.constant 0 : i32
    return %arg0, %c0_i32, %arg1 : i32, i32, i32
  }
  func.func @transform_5(%arg0: i32, %arg1: i32) -> (i32, i32, i32) {
    %c0_i32 = arith.constant 0 : i32
    %c0_i32_0 = arith.constant 0 : i32
    %c0_i32_1 = arith.constant 0 : i32
    return %arg0, %c0_i32, %c0_i32_0 : i32, i32, i32
  }
  func.func @transform_6(%arg0: i32, %arg1: i32) -> (i32, i32, i32) {
    %c0_i32 = arith.constant 0 : i32
    %c0_i32_0 = arith.constant 0 : i32
    %c0_i32_1 = arith.constant 0 : i32
    return %arg0, %c0_i32, %c0_i32_0 : i32, i32, i32
  }
}

</mosaic_0001>

<llo_original>
// kernel: stack_encoder.5
$region0: #{stack_encoder.5}
  #allocation0 [shape = 'u32[]', space=smem, size = 0x4, offset = 0x4, fixed_abs, tag = 'smem constant byte address 0x4 - core index']
  #allocation1 [shape = 'u32[72,128]{1,0:T(1,128)}', space=vmem, size = 0x9000, scoped, tag = 'internal scratch']
  %s0 = inlined_call_operand.vmem [shape: f32[2,8,1], index: 0, kind: input, shape index: {}]
  %s1 = inlined_call_operand.vmem [shape: f32[2,8,1], index: 1, kind: input, shape index: {}]
  %s2 = inlined_call_operand.vmem [shape: f32[2,8,128], index: 2, kind: input, shape index: {}, may-alias: {2,3}]
  %s3 = inlined_call_operand.vmem [shape: f32[2,8,128], index: 3, kind: output, shape index: {}, may-alias: {2,3}]
  %s4 = sld [smem:[#allocation0]]
  $region45: #{stack_encoder.5} parent=0
    _
  %s6 = ssub.s32 1, %s4
  %s7 = scalar_select 0, %s6, %s4
  loop: start=0, step=1, limit=4
  $region2: #{stack_encoder.5} parent=0 // loop_pre_header
    _
  $region3: #{stack_encoder.5} parent=0 // loop_header
    %s9 = sphi 0, %s13
    %p10 = scmp.ge.s32.totalorder %s9, 4
    %s16 = sphi 0, %s28
    %s17 = sphi 0, %s24
    %s18 = sphi 0, %s16
    %s19 = sphi 0, %s17
    %s20 = sphi 0, %s18
    %s21 = sphi 0, %s19
    %s31 = sphi 0, %s33
    %s34 = sphi 0, %s31
    %s35 = sphi 0, %s34
    %s51 = sphi 0, %s35
    %s57 = sphi 0, %s59
    %s60 = sphi 0, %s57
    %s61 = sphi 0, %s60
    %s77 = sphi 0, %s61
    %s85 = sphi 0, %s87
    %s88 = sphi 0, %s85
    %s89 = sphi 0, %s88
    %s105 = sphi 0, %s89
    %s113 = sphi 0, %s115
    %s116 = sphi 0, %s113
    %s117 = sphi 0, %s116
    %s133 = sphi 0, %s117
  $region4: #{stack_encoder.5} parent=0 // loop_header_branch
    %12 = sbr.rel (%p10) target = $region8
  $region5: #{stack_encoder.5} parent=0 // loop_body
    %s14 = ssub.s32 %s9, 1
    %s15 = ssub.s32 %s9, 2
    %s22 = sadd.s32 1, %s17
    %p23 = scmp.ge.s32.totalorder %s22, 1
    %s24 = scalar_select %p23, 0, %s22
    %s25 = sadd.s32 1, %s16
    %s26 = scalar_select %p23, %s25, %s16
    %p27 = scmp.ge.s32.totalorder %s26, 2
    %s28 = scalar_select %p27, 0, %s26
    %s29 = ssub.s32 %s16, %s28
    %p30 = scmp.eq.s32.totalorder %s29, 0
    %s32 = sadd.s32 %s31, 1
    %s33 = scalar_select %p30, %s31, %s32
    %p36 = pneg %p30
    %p37 = scmp.eq.s32.totalorder %s9, 1
    %p38 = por %p36, %p37
    %p39 = scmp.ne.s32.totalorder %s31, %s34
    %p40 = scmp.eq.s32.totalorder %s9, 0
    %p41 = por %p39, %p40
    %p42 = scmp.ne.s32.totalorder %s31, %s34
    %p43 = scmp.eq.s32.totalorder %s14, 1
    %p44 = por %p42, %p43
    %p45 = scmp.ne.s32.totalorder %s34, %s35
    %p46 = scmp.eq.s32.totalorder %s14, 0
    %p47 = por %p45, %p46
    %p48 = scmp.ne.s32.totalorder %s34, %s35
    %p49 = scmp.eq.s32.totalorder %s15, 1
    %p50 = por %p48, %p49
    %p52 = scmp.ne.s32.totalorder %s35, %s51
    %p53 = scmp.eq.s32.totalorder %s15, 0
    %p54 = por %p52, %p53
    %s55 = ssub.s32 %s16, %s28
    %p56 = scmp.eq.s32.totalorder %s55, 0
    %s58 = sadd.s32 %s57, 1
    %s59 = scalar_select %p56, %s57, %s58
    %p62 = pneg %p56
    %p63 = scmp.eq.s32.totalorder %s9, 1
    %p64 = por %p62, %p63
    %p65 = scmp.ne.s32.totalorder %s57, %s60
    %p66 = scmp.eq.s32.totalorder %s9, 0
    %p67 = por %p65, %p66
    %p68 = scmp.ne.s32.totalorder %s57, %s60
    %p69 = scmp.eq.s32.totalorder %s14, 1
    %p70 = por %p68, %p69
    %p71 = scmp.ne.s32.totalorder %s60, %s61
    %p72 = scmp.eq.s32.totalorder %s14, 0
    %p73 = por %p71, %p72
    %p74 = scmp.ne.s32.totalorder %s60, %s61
    %p75 = scmp.eq.s32.totalorder %s15, 1
    %p76 = por %p74, %p75
    %p78 = scmp.ne.s32.totalorder %s61, %s77
    %p79 = scmp.eq.s32.totalorder %s15, 0
    %p80 = por %p78, %p79
    %s81 = ssub.s32 %s16, %s28
    %s82 = ssub.s32 %s17, %s24
    %s83 = sor.u32 %s81, %s82
    %p84 = scmp.eq.s32.totalorder %s83, 0
    %s86 = sadd.s32 %s85, 1
    %s87 = scalar_select %p84, %s85, %s86
    %p90 = pneg %p84
    %p91 = scmp.eq.s32.totalorder %s9, 1
    %p92 = por %p90, %p91
    %p93 = scmp.ne.s32.totalorder %s85, %s88
    %p94 = scmp.eq.s32.totalorder %s9, 0
    %p95 = por %p93, %p94
    %p96 = scmp.ne.s32.totalorder %s85, %s88
    %p97 = scmp.eq.s32.totalorder %s14, 1
    %p98 = por %p96, %p97
    %p99 = scmp.ne.s32.totalorder %s88, %s89
    %p100 = scmp.eq.s32.totalorder %s14, 0
    %p101 = por %p99, %p100
    %p102 = scmp.ne.s32.totalorder %s88, %s89
    %p103 = scmp.eq.s32.totalorder %s15, 1
    %p104 = por %p102, %p103
    %p106 = scmp.ne.s32.totalorder %s89, %s105
    %p107 = scmp.eq.s32.totalorder %s15, 0
    %p108 = por %p106, %p107
    %s109 = ssub.s32 %s16, %s28
    %s110 = ssub.s32 %s17, %s24
    %s111 = sor.u32 %s109, %s110
    %p112 = scmp.eq.s32.totalorder %s111, 0
    %s114 = sadd.s32 %s113, 1
    %s115 = scalar_select %p112, %s113, %s114
    %p118 = pneg %p112
    %p119 = scmp.eq.s32.totalorder %s9, 1
    %p120 = por %p118, %p119
    %p121 = scmp.ne.s32.totalorder %s113, %s116
    %p122 = scmp.eq.s32.totalorder %s9, 0
    %p123 = por %p121, %p122
    %p124 = scmp.ne.s32.totalorder %s113, %s116
    %p125 = scmp.eq.s32.totalorder %s14, 1
    %p126 = por %p124, %p125
    %p127 = scmp.ne.s32.totalorder %s116, %s117
    %p128 = scmp.eq.s32.totalorder %s14, 0
    %p129 = por %p127, %p128
    %p130 = scmp.ne.s32.totalorder %s116, %s117
    %p131 = scmp.eq.s32.totalorder %s15, 1
    %p132 = por %p130, %p131
    %p134 = scmp.ne.s32.totalorder %s117, %s133
    %p135 = scmp.eq.s32.totalorder %s15, 0
    %p136 = por %p134, %p135
    %p137 = scmp.le.s32.totalorder 1, %s9
    %p138 = scmp.lt.s32.totalorder %s9, 3
    %p139 = pnand %p137, %p138
    %p140 = pneg %p139
    // Predicated region
    $region9: #{stack_encoder.5} parent=5 // pred_check
      _
    $region10: #{stack_encoder.5} parent=5 // pred_check_branch
      %142 = sbr.rel (%p139) target = $region12
    $region11: #{stack_encoder.5} parent=5 // pred_region
      %s143 = ssub.s32 %s9, 1
    $region12: #{stack_encoder.5} parent=5 // pred_fallthru
      _
    %p144 = scmp.lt.s32.totalorder %s9, 2
    // Predicated region
    $region13: #{stack_encoder.5} parent=5 // pred_check
      %p145 = pneg %p144
    $region14: #{stack_encoder.5} parent=5 // pred_check_branch
      %147 = sbr.rel (%p145) target = $region16
    $region15: #{stack_encoder.5} parent=5 // pred_region
      // Predicated region
      $region17: #{stack_encoder.5} parent=15 // pred_check
        %p148 = pneg %p41
      $region18: #{stack_encoder.5} parent=15 // pred_check_branch
        %150 = sbr.rel (%p148) target = $region20
      $region19: #{stack_encoder.5} parent=15 // pred_region
        %p151 = scmp.lt.s32.totalorder %s16, 1
        %s152 = scalar_select %p151, %s16, 1
        %s153 = smul.addr %s152, 8
        %s154 = scalar_lea.vmem %s0, %s153
      $region20: #{stack_encoder.5} parent=15 // pred_fallthru
        _
      // Predicated region
      $region21: #{stack_encoder.5} parent=15 // pred_check
        %p155 = pneg %p67
      $region22: #{stack_encoder.5} parent=15 // pred_check_branch
        %157 = sbr.rel (%p155) target = $region24
      $region23: #{stack_encoder.5} parent=15 // pred_region
        %p158 = scmp.lt.s32.totalorder %s16, 1
        %s159 = scalar_select %p158, %s16, 1
        %s160 = smul.addr %s159, 8
        %s161 = scalar_lea.vmem %s1, %s160
      $region24: #{stack_encoder.5} parent=15 // pred_fallthru
        _
      // Predicated region
      $region25: #{stack_encoder.5} parent=15 // pred_check
        %p162 = pneg %p95
      $region26: #{stack_encoder.5} parent=15 // pred_check_branch
        %164 = sbr.rel (%p162) target = $region28
      $region27: #{stack_encoder.5} parent=15 // pred_region
        %p165 = scmp.lt.s32.totalorder %s16, 1
        %s166 = scalar_select %p165, %s16, 1
        %p167 = scmp.lt.s32.totalorder %s17, 0
        %s168 = scalar_select %p167, %s17, 0
        %s169 = sadd.s32 %s168, %s166
        %s170 = smul.addr %s169, 8
        %s171 = scalar_lea.vmem %s2, %s170
      $region28: #{stack_encoder.5} parent=15 // pred_fallthru
        _
    $region16: #{stack_encoder.5} parent=5 // pred_fallthru
      _
    %p172 = scmp.le.s32.totalorder 1, %s9
    %p173 = scmp.lt.s32.totalorder %s9, 3
    %p174 = pnand %p172, %p173
    %p175 = pneg %p174
    // Predicated region
    $region29: #{stack_encoder.5} parent=5 // pred_check
      _
    $region30: #{stack_encoder.5} parent=5 // pred_check_branch
      %177 = sbr.rel (%p174) target = $region32
    $region31: #{stack_encoder.5} parent=5 // pred_region
      %s178 = ssub.s32 %s9, 1
      %p179 = scmp.lt.s32.totalorder %s18, 1
      %s180 = scalar_select %p179, %s18, 1
      %s181 = smul.addr %s180, 8
      %s182 = scalar_lea.vmem %s0, %s181
      %p183 = pneg %p47
      %p184 = pneg %p44
      %p185 = scmp.lt.s32.totalorder %s18, 1
      %s186 = scalar_select %p185, %s18, 1
      %s187 = smul.addr %s186, 8
      %s188 = scalar_lea.vmem %s1, %s187
      %p189 = pneg %p73
      %p190 = pneg %p70
      %p191 = scmp.lt.s32.totalorder %s18, 1
      %s192 = scalar_select %p191, %s18, 1
      %p193 = scmp.lt.s32.totalorder %s19, 0
      %s194 = scalar_select %p193, %s19, 0
      %s195 = sadd.s32 %s194, %s192
      %s196 = smul.addr %s195, 8
      %s197 = scalar_lea.vmem %s2, %s196
      %p198 = pneg %p101
      %p199 = pneg %p98
      %p200 = pneg %p129
      %p201 = pneg %p126
      %p202 = scmp.lt.s32.totalorder %s18, 1
      %s203 = scalar_select %p202, %s18, 1
      %p204 = scmp.lt.s32.totalorder %s19, 0
      %s205 = scalar_select %p204, %s19, 0
      %s206 = sadd.s32 %s205, %s203
      %s207 = smul.addr %s206, 8
      %s208 = scalar_lea.vmem %s3, %s207
      %p209 = scmp.lt.s32.totalorder %s18, 1
      %s210 = scalar_select %p209, %s18, 1
      %s211 = smul.addr %s210, 8
      %s212 = scalar_lea.vmem %s0, %s211
      %p213 = scmp.lt.s32.totalorder %s18, 1
      %s214 = scalar_select %p213, %s18, 1
      %s215 = smul.addr %s214, 8
      %s216 = scalar_lea.vmem %s1, %s215
      %p217 = scmp.lt.s32.totalorder %s18, 1
      %s218 = scalar_select %p217, %s18, 1
      %p219 = scmp.lt.s32.totalorder %s19, 0
      %s220 = scalar_select %p219, %s19, 0
      %s221 = sadd.s32 %s220, %s218
      %s222 = smul.addr %s221, 8
      %s223 = scalar_lea.vmem %s2, %s222
      %p224 = scmp.lt.s32.totalorder %s18, 1
      %s225 = scalar_select %p224, %s18, 1
      %p226 = scmp.lt.s32.totalorder %s19, 0
      %s227 = scalar_select %p226, %s19, 0
      %s228 = sadd.s32 %s227, %s225
      %s229 = smul.addr %s228, 8
      %s230 = scalar_lea.vmem %s3, %s229
      %v231 = vld [vmem:[%s223] sm:$0xff]
      %v232 = vld [vmem:[%s212] sm:$0xff]
      %234 = vset.pattern.permute.xlu0 0
      %235 = vperm.xlu0 %234, %v232
      %v236 = vpop.permute.xlu0 %235
      %v238 = vmul.f32 %v231, %v236
      %v239 = vld [vmem:[%s216] sm:$0xff]
      %241 = vset.pattern.permute.xlu0 0
      %242 = vperm.xlu0 %241, %v239
      %v243 = vpop.permute.xlu0 %242
      %v245 = vadd.f32 %v238, %v243
      %vm246 = vcmp.ge.f32.partialorder %v245, 0.0
      %v247 = vmul.f32 %v245, 0.01
      %v248 = vsel %vm246, %v245, %v247
      %249 = vst [vmem:[%s230] sm:$0xff] %v248
      %p250 = scmp.lt.s32.totalorder %s18, 1
      %s251 = scalar_select %p250, %s18, 1
      %p252 = scmp.lt.s32.totalorder %s19, 0
      %s253 = scalar_select %p252, %s19, 0
      %s254 = sadd.s32 %s253, %s251
      %s255 = smul.addr %s254, 8
      %s256 = scalar_lea.vmem %s3, %s255
      // Predicated region
      $region33: #{stack_encoder.5} parent=31 // pred_check
        %p257 = pneg %p126
      $region34: #{stack_encoder.5} parent=31 // pred_check_branch
        %259 = sbr.rel (%p257) target = $region36
      $region35: #{stack_encoder.5} parent=31 // pred_region
        _
      $region36: #{stack_encoder.5} parent=31 // pred_fallthru
        _
    $region32: #{stack_encoder.5} parent=5 // pred_fallthru
      _
    %p260 = scmp.le.s32.totalorder 2, %s9
    // Predicated region
    $region37: #{stack_encoder.5} parent=5 // pred_check
      %p261 = pneg %p260
    $region38: #{stack_encoder.5} parent=5 // pred_check_branch
      %263 = sbr.rel (%p261) target = $region40
    $region39: #{stack_encoder.5} parent=5 // pred_region
      %s264 = ssub.s32 %s9, 2
      // Predicated region
      $region41: #{stack_encoder.5} parent=39 // pred_check
        %p265 = pneg %p132
      $region42: #{stack_encoder.5} parent=39 // pred_check_branch
        %267 = sbr.rel (%p265) target = $region44
      $region43: #{stack_encoder.5} parent=39 // pred_region
        %p268 = scmp.lt.s32.totalorder %s20, 1
        %s269 = scalar_select %p268, %s20, 1
        %p270 = scmp.lt.s32.totalorder %s21, 0
        %s271 = scalar_select %p270, %s21, 0
        %s272 = sadd.s32 %s271, %s269
        %s273 = smul.addr %s272, 8
        %s274 = scalar_lea.vmem %s3, %s273
      $region44: #{stack_encoder.5} parent=39 // pred_fallthru
        _
    $region40: #{stack_encoder.5} parent=5 // pred_fallthru
      _
  $region6: #{stack_encoder.5} parent=0 // loop_footer
    %s13 = sadd.s32 1, %s9
  $region7: #{stack_encoder.5} parent=0 // loop_footer_branch
    %8 = sbr.rel target = $region3
  $region8: #{stack_encoder.5} parent=0 // loop_exit
    _

// kernel: stack_encoder.4
$region0: #{stack_encoder.4}
  #allocation0 [shape = 'u32[]', space=smem, size = 0x4, offset = 0x4, fixed_abs, tag = 'smem constant byte address 0x4 - core index']
  #allocation1 [shape = 'u32[72,128]{1,0:T(1,128)}', space=vmem, size = 0x9000, scoped, tag = 'internal scratch']
  #allocation2 [shape = 'f32[8,1]{1,0:T(8,128)}', space=vmem, size = 0x1000, scoped, tag = 'scratch operand']
  #allocation3 [shape = 'f32[8,1]{1,0:T(8,128)}', space=vmem, size = 0x1000, scoped, tag = 'scratch operand']
  %s0 = inlined_call_operand.vmem [shape: bf16[8,128], index: 0, kind: input, shape index: {}]
  %s1 = inlined_call_operand.vmem [shape: f32[8,1], index: 1, kind: input, shape index: {}]
  %s2 = inlined_call_operand.vmem [shape: f32[8,1], index: 2, kind: input, shape index: {}]
  %s3 = inlined_call_operand.vmem [shape: bf16[2,128,128], index: 3, kind: input, shape index: {}]
  %s4 = inlined_call_operand.vmem [shape: f32[2,8,128], index: 4, kind: output, shape index: {0}]
  %s5 = inlined_call_operand.vmem [shape: f32[2,8,1], index: 5, kind: output, shape index: {1}]
  %s6 = inlined_call_operand.vmem [shape: f32[2,8,1], index: 6, kind: output, shape index: {2}]
  %7 = xla_tuple %s4, %s5, %s6
  %s8 = sld [smem:[#allocation0]]
  $region73: #{stack_encoder.4} parent=0
    _
  %s10 = ssub.s32 1, %s8
  %s11 = scalar_select 0, %s10, %s8
  loop: start=0, step=1, limit=4
  $region2: #{stack_encoder.4} parent=0 // loop_pre_header
    _
  $region3: #{stack_encoder.4} parent=0 // loop_header
    %s13 = sphi 0, %s17
    %p14 = scmp.ge.s32.totalorder %s13, 4
    %s20 = sphi 0, %s32
    %s21 = sphi 0, %s28
    %s22 = sphi 0, %s20
    %s23 = sphi 0, %s21
    %s24 = sphi 0, %s22
    %s25 = sphi 0, %s23
    %s33 = sphi 0, %s33
    %s35 = sphi 0, %s33
    %s36 = sphi 0, %s35
    %s50 = sphi 0, %s36
    %s54 = sphi 0, %s54
    %s56 = sphi 0, %s54
    %s57 = sphi 0, %s56
    %s71 = sphi 0, %s57
    %s75 = sphi 0, %s75
    %s77 = sphi 0, %s75
    %s78 = sphi 0, %s77
    %s92 = sphi 0, %s78
    %s100 = sphi 0, %s102
    %s103 = sphi 0, %s100
    %s104 = sphi 0, %s103
    %s120 = sphi 0, %s104
    %s128 = sphi 0, %s130
    %s131 = sphi 0, %s128
    %s132 = sphi 0, %s131
    %s148 = sphi 0, %s132
    %s154 = sphi 0, %s156
    %s157 = sphi 0, %s154
    %s158 = sphi 0, %s157
    %s174 = sphi 0, %s158
    %s180 = sphi 0, %s182
    %s183 = sphi 0, %s180
    %s184 = sphi 0, %s183
    %s200 = sphi 0, %s184
  $region4: #{stack_encoder.4} parent=0 // loop_header_branch
    %16 = sbr.rel (%p14) target = $region8
  $region5: #{stack_encoder.4} parent=0 // loop_body
    %s18 = ssub.s32 %s13, 1
    %s19 = ssub.s32 %s13, 2
    %s26 = sadd.s32 1, %s21
    %p27 = scmp.ge.s32.totalorder %s26, 1
    %s28 = scalar_select %p27, 0, %s26
    %s29 = sadd.s32 1, %s20
    %s30 = scalar_select %p27, %s29, %s20
    %p31 = scmp.ge.s32.totalorder %s30, 2
    %s32 = scalar_select %p31, 0, %s30
    %s34 = sadd.s32 %s33, 1
    %p37 = scmp.eq.s32.totalorder %s13, 1
    %p38 = scmp.ne.s32.totalorder %s33, %s35
    %p39 = scmp.eq.s32.totalorder %s13, 0
    %p40 = por %p38, %p39
    %p41 = scmp.ne.s32.totalorder %s33, %s35
    %p42 = scmp.eq.s32.totalorder %s18, 1
    %p43 = por %p41, %p42
    %p44 = scmp.ne.s32.totalorder %s35, %s36
    %p45 = scmp.eq.s32.totalorder %s18, 0
    %p46 = por %p44, %p45
    %p47 = scmp.ne.s32.totalorder %s35, %s36
    %p48 = scmp.eq.s32.totalorder %s19, 1
    %p49 = por %p47, %p48
    %p51 = scmp.ne.s32.totalorder %s36, %s50
    %p52 = scmp.eq.s32.totalorder %s19, 0
    %p53 = por %p51, %p52
    %s55 = sadd.s32 %s54, 1
    %p58 = scmp.eq.s32.totalorder %s13, 1
    %p59 = scmp.ne.s32.totalorder %s54, %s56
    %p60 = scmp.eq.s32.totalorder %s13, 0
    %p61 = por %p59, %p60
    %p62 = scmp.ne.s32.totalorder %s54, %s56
    %p63 = scmp.eq.s32.totalorder %s18, 1
    %p64 = por %p62, %p63
    %p65 = scmp.ne.s32.totalorder %s56, %s57
    %p66 = scmp.eq.s32.totalorder %s18, 0
    %p67 = por %p65, %p66
    %p68 = scmp.ne.s32.totalorder %s56, %s57
    %p69 = scmp.eq.s32.totalorder %s19, 1
    %p70 = por %p68, %p69
    %p72 = scmp.ne.s32.totalorder %s57, %s71
    %p73 = scmp.eq.s32.totalorder %s19, 0
    %p74 = por %p72, %p73
    %s76 = sadd.s32 %s75, 1
    %p79 = scmp.eq.s32.totalorder %s13, 1
    %p80 = scmp.ne.s32.totalorder %s75, %s77
    %p81 = scmp.eq.s32.totalorder %s13, 0
    %p82 = por %p80, %p81
    %p83 = scmp.ne.s32.totalorder %s75, %s77
    %p84 = scmp.eq.s32.totalorder %s18, 1
    %p85 = por %p83, %p84
    %p86 = scmp.ne.s32.totalorder %s77, %s78
    %p87 = scmp.eq.s32.totalorder %s18, 0
    %p88 = por %p86, %p87
    %p89 = scmp.ne.s32.totalorder %s77, %s78
    %p90 = scmp.eq.s32.totalorder %s19, 1
    %p91 = por %p89, %p90
    %p93 = scmp.ne.s32.totalorder %s78, %s92
    %p94 = scmp.eq.s32.totalorder %s19, 0
    %p95 = por %p93, %p94
    %s96 = ssub.s32 %s20, %s32
    %s97 = ssub.s32 %s21, %s28
    %s98 = sor.u32 %s96, %s97
    %p99 = scmp.eq.s32.totalorder %s98, 0
    %s101 = sadd.s32 %s100, 1
    %s102 = scalar_select %p99, %s100, %s101
    %p105 = pneg %p99
    %p106 = scmp.eq.s32.totalorder %s13, 1
    %p107 = por %p105, %p106
    %p108 = scmp.ne.s32.totalorder %s100, %s103
    %p109 = scmp.eq.s32.totalorder %s13, 0
    %p110 = por %p108, %p109
    %p111 = scmp.ne.s32.totalorder %s100, %s103
    %p112 = scmp.eq.s32.totalorder %s18, 1
    %p113 = por %p111, %p112
    %p114 = scmp.ne.s32.totalorder %s103, %s104
    %p115 = scmp.eq.s32.totalorder %s18, 0
    %p116 = por %p114, %p115
    %p117 = scmp.ne.s32.totalorder %s103, %s104
    %p118 = scmp.eq.s32.totalorder %s19, 1
    %p119 = por %p117, %p118
    %p121 = scmp.ne.s32.totalorder %s104, %s120
    %p122 = scmp.eq.s32.totalorder %s19, 0
    %p123 = por %p121, %p122
    %s124 = ssub.s32 %s20, %s32
    %s125 = ssub.s32 %s21, %s28
    %s126 = sor.u32 %s124, %s125
    %p127 = scmp.eq.s32.totalorder %s126, 0
    %s129 = sadd.s32 %s128, 1
    %s130 = scalar_select %p127, %s128, %s129
    %p133 = pneg %p127
    %p134 = scmp.eq.s32.totalorder %s13, 1
    %p135 = por %p133, %p134
    %p136 = scmp.ne.s32.totalorder %s128, %s131
    %p137 = scmp.eq.s32.totalorder %s13, 0
    %p138 = por %p136, %p137
    %p139 = scmp.ne.s32.totalorder %s128, %s131
    %p140 = scmp.eq.s32.totalorder %s18, 1
    %p141 = por %p139, %p140
    %p142 = scmp.ne.s32.totalorder %s131, %s132
    %p143 = scmp.eq.s32.totalorder %s18, 0
    %p144 = por %p142, %p143
    %p145 = scmp.ne.s32.totalorder %s131, %s132
    %p146 = scmp.eq.s32.totalorder %s19, 1
    %p147 = por %p145, %p146
    %p149 = scmp.ne.s32.totalorder %s132, %s148
    %p150 = scmp.eq.s32.totalorder %s19, 0
    %p151 = por %p149, %p150
    %s152 = ssub.s32 %s20, %s32
    %p153 = scmp.eq.s32.totalorder %s152, 0
    %s155 = sadd.s32 %s154, 1
    %s156 = scalar_select %p153, %s154, %s155
    %p159 = pneg %p153
    %p160 = scmp.eq.s32.totalorder %s13, 1
    %p161 = por %p159, %p160
    %p162 = scmp.ne.s32.totalorder %s154, %s157
    %p163 = scmp.eq.s32.totalorder %s13, 0
    %p164 = por %p162, %p163
    %p165 = scmp.ne.s32.totalorder %s154, %s157
    %p166 = scmp.eq.s32.totalorder %s18, 1
    %p167 = por %p165, %p166
    %p168 = scmp.ne.s32.totalorder %s157, %s158
    %p169 = scmp.eq.s32.totalorder %s18, 0
    %p170 = por %p168, %p169
    %p171 = scmp.ne.s32.totalorder %s157, %s158
    %p172 = scmp.eq.s32.totalorder %s19, 1
    %p173 = por %p171, %p172
    %p175 = scmp.ne.s32.totalorder %s158, %s174
    %p176 = scmp.eq.s32.totalorder %s19, 0
    %p177 = por %p175, %p176
    %s178 = ssub.s32 %s20, %s32
    %p179 = scmp.eq.s32.totalorder %s178, 0
    %s181 = sadd.s32 %s180, 1
    %s182 = scalar_select %p179, %s180, %s181
    %p185 = pneg %p179
    %p186 = scmp.eq.s32.totalorder %s13, 1
    %p187 = por %p185, %p186
    %p188 = scmp.ne.s32.totalorder %s180, %s183
    %p189 = scmp.eq.s32.totalorder %s13, 0
    %p190 = por %p188, %p189
    %p191 = scmp.ne.s32.totalorder %s180, %s183
    %p192 = scmp.eq.s32.totalorder %s18, 1
    %p193 = por %p191, %p192
    %p194 = scmp.ne.s32.totalorder %s183, %s184
    %p195 = scmp.eq.s32.totalorder %s18, 0
    %p196 = por %p194, %p195
    %p197 = scmp.ne.s32.totalorder %s183, %s184
    %p198 = scmp.eq.s32.totalorder %s19, 1
    %p199 = por %p197, %p198
    %p201 = scmp.ne.s32.totalorder %s184, %s200
    %p202 = scmp.eq.s32.totalorder %s19, 0
    %p203 = por %p201, %p202
    %p204 = scmp.le.s32.totalorder 1, %s13
    %p205 = scmp.lt.s32.totalorder %s13, 3
    %p206 = pnand %p204, %p205
    %p207 = pneg %p206
    // Predicated region
    $region9: #{stack_encoder.4} parent=5 // pred_check
      _
    $region10: #{stack_encoder.4} parent=5 // pred_check_branch
      %209 = sbr.rel (%p206) target = $region12
    $region11: #{stack_encoder.4} parent=5 // pred_region
      %s210 = ssub.s32 %s13, 1
      // Predicated region
      $region13: #{stack_encoder.4} parent=11 // pred_check
        %p211 = pneg %p46
      $region14: #{stack_encoder.4} parent=11 // pred_check_branch
        %213 = sbr.rel (%p211) target = $region16
      $region15: #{stack_encoder.4} parent=11 // pred_region
        _
      $region16: #{stack_encoder.4} parent=11 // pred_fallthru
        _
      // Predicated region
      $region17: #{stack_encoder.4} parent=11 // pred_check
        %p214 = pneg %p67
      $region18: #{stack_encoder.4} parent=11 // pred_check_branch
        %216 = sbr.rel (%p214) target = $region20
      $region19: #{stack_encoder.4} parent=11 // pred_region
        _
      $region20: #{stack_encoder.4} parent=11 // pred_fallthru
        _
      // Predicated region
      $region21: #{stack_encoder.4} parent=11 // pred_check
        %p217 = pneg %p88
      $region22: #{stack_encoder.4} parent=11 // pred_check_branch
        %219 = sbr.rel (%p217) target = $region24
      $region23: #{stack_encoder.4} parent=11 // pred_region
        _
      $region24: #{stack_encoder.4} parent=11 // pred_fallthru
        _
    $region12: #{stack_encoder.4} parent=5 // pred_fallthru
      _
    %p220 = scmp.lt.s32.totalorder %s13, 2
    // Predicated region
    $region25: #{stack_encoder.4} parent=5 // pred_check
      %p221 = pneg %p220
    $region26: #{stack_encoder.4} parent=5 // pred_check_branch
      %223 = sbr.rel (%p221) target = $region28
    $region27: #{stack_encoder.4} parent=5 // pred_region
      // Predicated region
      $region29: #{stack_encoder.4} parent=27 // pred_check
        %p224 = pneg %p110
      $region30: #{stack_encoder.4} parent=27 // pred_check_branch
        %226 = sbr.rel (%p224) target = $region32
      $region31: #{stack_encoder.4} parent=27 // pred_region
        %p227 = scmp.lt.s32.totalorder %s20, 1
        %s228 = scalar_select %p227, %s20, 1
        %p229 = scmp.lt.s32.totalorder %s21, 0
        %s230 = scalar_select %p229, %s21, 0
        %s231 = smul.addr %s228, 16
        %s232 = sadd.s32 %s230, %s231
        %s233 = smul.addr %s232, 4
        %s234 = scalar_lea.vmem %s3, %s233
      $region32: #{stack_encoder.4} parent=27 // pred_fallthru
        _
    $region28: #{stack_encoder.4} parent=5 // pred_fallthru
      _
    %p235 = scmp.le.s32.totalorder 1, %s13
    %p236 = scmp.lt.s32.totalorder %s13, 3
    %p237 = pnand %p235, %p236
    %p238 = pneg %p237
    // Predicated region
    $region33: #{stack_encoder.4} parent=5 // pred_check
      _
    $region34: #{stack_encoder.4} parent=5 // pred_check_branch
      %240 = sbr.rel (%p237) target = $region36
    $region35: #{stack_encoder.4} parent=5 // pred_region
      %s241 = ssub.s32 %s13, 1
      %p242 = pneg %p46
      %p243 = pneg %p43
      %p244 = pneg %p67
      %p245 = pneg %p64
      %p246 = pneg %p88
      %p247 = pneg %p85
      %p248 = scmp.lt.s32.totalorder %s22, 1
      %s249 = scalar_select %p248, %s22, 1
      %p250 = scmp.lt.s32.totalorder %s23, 0
      %s251 = scalar_select %p250, %s23, 0
      %s252 = smul.addr %s249, 16
      %s253 = sadd.s32 %s251, %s252
      %s254 = smul.addr %s253, 4
      %s255 = scalar_lea.vmem %s3, %s254
      %p256 = pneg %p116
      %p257 = pneg %p113
      %p258 = pneg %p144
      %p259 = pneg %p141
      %p260 = scmp.lt.s32.totalorder %s22, 1
      %s261 = scalar_select %p260, %s22, 1
      %p262 = scmp.lt.s32.totalorder %s23, 0
      %s263 = scalar_select %p262, %s23, 0
      %s264 = sadd.s32 %s263, %s261
      %s265 = smul.addr %s264, 8
      %s266 = scalar_lea.vmem %s4, %s265
      %p267 = pneg %p170
      %p268 = pneg %p167
      %p269 = scmp.lt.s32.totalorder %s22, 1
      %s270 = scalar_select %p269, %s22, 1
      %s271 = smul.addr %s270, 8
      %s272 = scalar_lea.vmem %s5, %s271
      %p273 = pneg %p196
      %p274 = pneg %p193
      %p275 = scmp.lt.s32.totalorder %s22, 1
      %s276 = scalar_select %p275, %s22, 1
      %s277 = smul.addr %s276, 8
      %s278 = scalar_lea.vmem %s6, %s277
      %p279 = scmp.lt.s32.totalorder %s22, 1
      %s280 = scalar_select %p279, %s22, 1
      %p281 = scmp.lt.s32.totalorder %s23, 0
      %s282 = scalar_select %p281, %s23, 0
      %s283 = smul.addr %s280, 16
      %s284 = sadd.s32 %s282, %s283
      %s285 = smul.addr %s284, 4
      %s286 = scalar_lea.vmem %s3, %s285
      %p287 = scmp.lt.s32.totalorder %s22, 1
      %s288 = scalar_select %p287, %s22, 1
      %p289 = scmp.lt.s32.totalorder %s23, 0
      %s290 = scalar_select %p289, %s23, 0
      %s291 = sadd.s32 %s290, %s288
      %s292 = smul.addr %s291, 8
      %s293 = scalar_lea.vmem %s4, %s292
      %p294 = scmp.lt.s32.totalorder %s22, 1
      %s295 = scalar_select %p294, %s22, 1
      %s296 = smul.addr %s295, 8
      %s297 = scalar_lea.vmem %s5, %s296
      %p298 = scmp.lt.s32.totalorder %s22, 1
      %s299 = scalar_select %p298, %s22, 1
      %s300 = smul.addr %s299, 8
      %s301 = scalar_lea.vmem %s6, %s300
      %p302 = scmp.eq.s32.totalorder %s23, 0
      // Predicated region
      $region37: #{stack_encoder.4} parent=35 // pred_check
        %p303 = pneg %p302
      $region38: #{stack_encoder.4} parent=35 // pred_check_branch
        %305 = sbr.rel (%p303) target = $region40
      $region39: #{stack_encoder.4} parent=35 // pred_region
        %vm306 = vcmask 7168
        %307 = vst.msk [vmem:[#allocation2] sm:$0xff] %vm306, 0.0
        %308 = vst.msk [vmem:[#allocation3] sm:$0xff] %vm306, 0.0
      $region40: #{stack_encoder.4} parent=35 // pred_fallthru
        _
      %v309 = vld [vmem:[%s0] sm:$0xf]
      %v310 = vld [vmem:[%s286] sm:$0xf]
      %v311 = vld [vmem:[%s286 + $0x4] sm:$0xf]
      %v312 = vld [vmem:[%s286 + $0x8] sm:$0xf]
      %v313 = vld [vmem:[%s286 + $0xc] sm:$0xf]
      %v314 = vld [vmem:[%s286 + $0x10] sm:$0xf]
      %v315 = vld [vmem:[%s286 + $0x14] sm:$0xf]
      %v316 = vld [vmem:[%s286 + $0x18] sm:$0xf]
      %v317 = vld [vmem:[%s286 + $0x1c] sm:$0xf]
      %v318 = vld [vmem:[%s286 + $0x20] sm:$0xf]
      %v319 = vld [vmem:[%s286 + $0x24] sm:$0xf]
      %v320 = vld [vmem:[%s286 + $0x28] sm:$0xf]
      %v321 = vld [vmem:[%s286 + $0x2c] sm:$0xf]
      %v322 = vld [vmem:[%s286 + $0x30] sm:$0xf]
      %v323 = vld [vmem:[%s286 + $0x34] sm:$0xf]
      %v324 = vld [vmem:[%s286 + $0x38] sm:$0xf]
      %v325 = vld [vmem:[%s286 + $0x3c] sm:$0xf]
      %v342 = vunpack.c.l.b16 %v310
      %v343 = vunpack.c.l.b16 %v311
      %v344 = vunpack.c.l.b16 %v312
      %v345 = vunpack.c.l.b16 %v313
      %v346 = vunpack.c.l.b16 %v314
      %v347 = vunpack.c.l.b16 %v315
      %v348 = vunpack.c.l.b16 %v316
      %v349 = vunpack.c.l.b16 %v317
      %v350 = vunpack.c.l.b16 %v318
      %v351 = vunpack.c.l.b16 %v319
      %v352 = vunpack.c.l.b16 %v320
      %v353 = vunpack.c.l.b16 %v321
      %v354 = vunpack.c.l.b16 %v322
      %v355 = vunpack.c.l.b16 %v323
      %v356 = vunpack.c.l.b16 %v324
      %v357 = vunpack.c.l.b16 %v325
      %v358 = vpack.c.b16 %v343, %v342
      %v359 = vpack.c.b16 %v345, %v344
      %v360 = vpack.c.b16 %v347, %v346
      %v361 = vpack.c.b16 %v349, %v348
      %v362 = vpack.c.b16 %v351, %v350
      %v363 = vpack.c.b16 %v353, %v352
      %v364 = vpack.c.b16 %v355, %v354
      %v365 = vpack.c.b16 %v357, %v356
      %374 = vmatpush.bf16.msra.mxu0 %v365
      %375 = vmatpush.bf16.msra.mxu0 %v364
      %376 = vmatpush.bf16.msra.mxu0 %v363
      %377 = vmatpush.bf16.msra.mxu0 %v362
      %378 = vmatpush.bf16.msra.mxu0 %v361
      %379 = vmatpush.bf16.msra.mxu0 %v360
      %380 = vmatpush.bf16.msra.mxu0 %v359
      %381 = vmatpush.bf16.msra.mxu0 %v358
      %382 = vmatmul.bf16.gmra.mxu0 %v309
      %v383 = vpop.f32.mrf.mxu0
      %v384 = vadd.f32 0.0, %v383
      %v385 = vpop.f32.mrf.mxu0
      %386 = vdwg.mxu0
      %387 = vst [vmem:[%s293] sm:$0xff] %v384
      %v388 = vld [vmem:[#allocation2] sm:$0xff]
      %389 = vadd.xlane.f32.xlu0 %v384
      %v390 = vpop.xlane.xlu0 %389
      %v391 = vadd.f32 %v388, %v390
      %vm392 = vcmask 7168
      %393 = vst.msk [vmem:[#allocation2] sm:$0xff] %vm392, %v391
      %v394 = vld [vmem:[#allocation3] sm:$0xff]
      %v395 = vmul.f32 %v384, %v384
      %396 = vadd.xlane.f32.xlu0 %v395
      %v397 = vpop.xlane.xlu0 %396
      %v398 = vadd.f32 %v394, %v397
      %399 = vst.msk [vmem:[#allocation3] sm:$0xff] %vm392, %v398
      // Predicated region
      $region41: #{stack_encoder.4} parent=35 // pred_check
        %p400 = pneg %p302
      $region42: #{stack_encoder.4} parent=35 // pred_check_branch
        %402 = sbr.rel (%p400) target = $region44
      $region43: #{stack_encoder.4} parent=35 // pred_region
        %v403 = vld [vmem:[#allocation2] sm:$0xff]
        %v404 = vmul.f32 %v403, 0.015625
        %v405 = vld [vmem:[#allocation3] sm:$0xff]
        %v406 = vmul.f32 %v405, 0.015625
        %v407 = vmul.f32 %v404, %v404
        %v408 = vsub.f32 %v406, %v407
        %v409 = vmax.f32 %v408, 0.0
        %v410 = vadd.f32 %v409, 1e-05
        %v411 = vrsqrt.pop %v410
        %v412 = vmul.f32 %v411, %v410
        %v413 = vmul.f32 %v412, %v411
        %v414 = vmul.f32 0.5, %v413
        %v415 = vsub.f32 1.5, %v414
        %v416 = vmul.f32 %v411, %v415
        %vm417 = vweird.f32 %v410
        %vm418 = vweird.f32 %v411
        %vm419 = vmor %vm417, %vm418
        %v420 = vsel %vm419, %v411, %v416
        %v421 = vld [vmem:[%s1] sm:$0xff]
        %v422 = vmul.f32 %v421, %v420
        %423 = vst.msk [vmem:[%s297] sm:$0xff] %vm392, %v422
        %v424 = vld [vmem:[%s2] sm:$0xff]
        %v425 = vmul.f32 %v404, %v422
        %v426 = vsub.f32 %v424, %v425
        %427 = vst.msk [vmem:[%s301] sm:$0xff] %vm392, %v426
      $region44: #{stack_encoder.4} parent=35 // pred_fallthru
        _
      %p428 = scmp.lt.s32.totalorder %s22, 1
      %s429 = scalar_select %p428, %s22, 1
      %p430 = scmp.lt.s32.totalorder %s23, 0
      %s431 = scalar_select %p430, %s23, 0
      %s432 = sadd.s32 %s431, %s429
      %s433 = smul.addr %s432, 8
      %s434 = scalar_lea.vmem %s4, %s433
      %p435 = scmp.lt.s32.totalorder %s22, 1
      %s436 = scalar_select %p435, %s22, 1
      %s437 = smul.addr %s436, 8
      %s438 = scalar_lea.vmem %s5, %s437
      %p439 = scmp.lt.s32.totalorder %s22, 1
      %s440 = scalar_select %p439, %s22, 1
      %s441 = smul.addr %s440, 8
      %s442 = scalar_lea.vmem %s6, %s441
      // Predicated region
      $region45: #{stack_encoder.4} parent=35 // pred_check
        %p443 = pneg %p141
      $region46: #{stack_encoder.4} parent=35 // pred_check_branch
        %445 = sbr.rel (%p443) target = $region48
      $region47: #{stack_encoder.4} parent=35 // pred_region
        _
      $region48: #{stack_encoder.4} parent=35 // pred_fallthru
        _
      // Predicated region
      $region49: #{stack_encoder.4} parent=35 // pred_check
        %p446 = pneg %p167
      $region50: #{stack_encoder.4} parent=35 // pred_check_branch
        %448 = sbr.rel (%p446) target = $region52
      $region51: #{stack_encoder.4} parent=35 // pred_region
        _
      $region52: #{stack_encoder.4} parent=35 // pred_fallthru
        _
      // Predicated region
      $region53: #{stack_encoder.4} parent=35 // pred_check
        %p449 = pneg %p193
      $region54: #{stack_encoder.4} parent=35 // pred_check_branch
        %451 = sbr.rel (%p449) target = $region56
      $region55: #{stack_encoder.4} parent=35 // pred_region
        _
      $region56: #{stack_encoder.4} parent=35 // pred_fallthru
        _
    $region36: #{stack_encoder.4} parent=5 // pred_fallthru
      _
    %p452 = scmp.le.s32.totalorder 2, %s13
    // Predicated region
    $region57: #{stack_encoder.4} parent=5 // pred_check
      %p453 = pneg %p452
    $region58: #{stack_encoder.4} parent=5 // pred_check_branch
      %455 = sbr.rel (%p453) target = $region60
    $region59: #{stack_encoder.4} parent=5 // pred_region
      %s456 = ssub.s32 %s13, 2
      // Predicated region
      $region61: #{stack_encoder.4} parent=59 // pred_check
        %p457 = pneg %p147
      $region62: #{stack_encoder.4} parent=59 // pred_check_branch
        %459 = sbr.rel (%p457) target = $region64
      $region63: #{stack_encoder.4} parent=59 // pred_region
        %p460 = scmp.lt.s32.totalorder %s24, 1
        %s461 = scalar_select %p460, %s24, 1
        %p462 = scmp.lt.s32.totalorder %s25, 0
        %s463 = scalar_select %p462, %s25, 0
        %s464 = sadd.s32 %s463, %s461
        %s465 = smul.addr %s464, 8
        %s466 = scalar_lea.vmem %s4, %s465
      $region64: #{stack_encoder.4} parent=59 // pred_fallthru
        _
      // Predicated region
      $region65: #{stack_encoder.4} parent=59 // pred_check
        %p467 = pneg %p173
      $region66: #{stack_encoder.4} parent=59 // pred_check_branch
        %469 = sbr.rel (%p467) target = $region68
      $region67: #{stack_encoder.4} parent=59 // pred_region
        %p470 = scmp.lt.s32.totalorder %s24, 1
        %s471 = scalar_select %p470, %s24, 1
        %s472 = smul.addr %s471, 8
        %s473 = scalar_lea.vmem %s5, %s472
      $region68: #{stack_encoder.4} parent=59 // pred_fallthru
        _
      // Predicated region
      $region69: #{stack_encoder.4} parent=59 // pred_check
        %p474 = pneg %p199
      $region70: #{stack_encoder.4} parent=59 // pred_check_branch
        %476 = sbr.rel (%p474) target = $region72
      $region71: #{stack_encoder.4} parent=59 // pred_region
        %p477 = scmp.lt.s32.totalorder %s24, 1
        %s478 = scalar_select %p477, %s24, 1
        %s479 = smul.addr %s478, 8
        %s480 = scalar_lea.vmem %s6, %s479
      $region72: #{stack_encoder.4} parent=59 // pred_fallthru
        _
    $region60: #{stack_encoder.4} parent=5 // pred_fallthru
      _
  $region6: #{stack_encoder.4} parent=0 // loop_footer
    %s17 = sadd.s32 1, %s13
  $region7: #{stack_encoder.4} parent=0 // loop_footer_branch
    %12 = sbr.rel target = $region3
  $region8: #{stack_encoder.4} parent=0 // loop_exit
    _

// kernel: stack_encoder.6
$region0: #{stack_encoder.6}
  #allocation0 [shape = 'u32[]', space=smem, size = 0x4, offset = 0x4, fixed_abs, tag = 'smem constant byte address 0x4 - core index']
  #allocation1 [shape = 'u32[72,128]{1,0:T(1,128)}', space=vmem, size = 0x9000, scoped, tag = 'internal scratch']
  #allocation2 [shape = 'f32[8,1]{1,0:T(8,128)}', space=vmem, size = 0x1000, scoped, tag = 'scratch operand']
  #allocation3 [shape = 'f32[8,1]{1,0:T(8,128)}', space=vmem, size = 0x1000, scoped, tag = 'scratch operand']
  %s0 = inlined_call_operand.vmem [shape: bf16[8,256], index: 0, kind: input, shape index: {}]
  %s1 = inlined_call_operand.vmem [shape: f32[8,1], index: 1, kind: input, shape index: {}]
  %s2 = inlined_call_operand.vmem [shape: f32[8,1], index: 2, kind: input, shape index: {}]
  %s3 = inlined_call_operand.vmem [shape: bf16[2,256,128], index: 3, kind: input, shape index: {}]
  %s4 = inlined_call_operand.vmem [shape: f32[2,8,128], index: 4, kind: output, shape index: {0}]
  %s5 = inlined_call_operand.vmem [shape: f32[2,8,1], index: 5, kind: output, shape index: {1}]
  %s6 = inlined_call_operand.vmem [shape: f32[2,8,1], index: 6, kind: output, shape index: {2}]
  %7 = xla_tuple %s4, %s5, %s6
  %s8 = sld [smem:[#allocation0]]
  $region73: #{stack_encoder.6} parent=0
    _
  %s10 = ssub.s32 1, %s8
  %s11 = scalar_select 0, %s10, %s8
  loop: start=0, step=1, limit=4
  $region2: #{stack_encoder.6} parent=0 // loop_pre_header
    _
  $region3: #{stack_encoder.6} parent=0 // loop_header
    %s13 = sphi 0, %s17
    %p14 = scmp.ge.s32.totalorder %s13, 4
    %s20 = sphi 0, %s32
    %s21 = sphi 0, %s28
    %s22 = sphi 0, %s20
    %s23 = sphi 0, %s21
    %s24 = sphi 0, %s22
    %s25 = sphi 0, %s23
    %s33 = sphi 0, %s33
    %s35 = sphi 0, %s33
    %s36 = sphi 0, %s35
    %s50 = sphi 0, %s36
    %s54 = sphi 0, %s54
    %s56 = sphi 0, %s54
    %s57 = sphi 0, %s56
    %s71 = sphi 0, %s57
    %s75 = sphi 0, %s75
    %s77 = sphi 0, %s75
    %s78 = sphi 0, %s77
    %s92 = sphi 0, %s78
    %s100 = sphi 0, %s102
    %s103 = sphi 0, %s100
    %s104 = sphi 0, %s103
    %s120 = sphi 0, %s104
    %s128 = sphi 0, %s130
    %s131 = sphi 0, %s128
    %s132 = sphi 0, %s131
    %s148 = sphi 0, %s132
    %s154 = sphi 0, %s156
    %s157 = sphi 0, %s154
    %s158 = sphi 0, %s157
    %s174 = sphi 0, %s158
    %s180 = sphi 0, %s182
    %s183 = sphi 0, %s180
    %s184 = sphi 0, %s183
    %s200 = sphi 0, %s184
  $region4: #{stack_encoder.6} parent=0 // loop_header_branch
    %16 = sbr.rel (%p14) target = $region8
  $region5: #{stack_encoder.6} parent=0 // loop_body
    %s18 = ssub.s32 %s13, 1
    %s19 = ssub.s32 %s13, 2
    %s26 = sadd.s32 1, %s21
    %p27 = scmp.ge.s32.totalorder %s26, 1
    %s28 = scalar_select %p27, 0, %s26
    %s29 = sadd.s32 1, %s20
    %s30 = scalar_select %p27, %s29, %s20
    %p31 = scmp.ge.s32.totalorder %s30, 2
    %s32 = scalar_select %p31, 0, %s30
    %s34 = sadd.s32 %s33, 1
    %p37 = scmp.eq.s32.totalorder %s13, 1
    %p38 = scmp.ne.s32.totalorder %s33, %s35
    %p39 = scmp.eq.s32.totalorder %s13, 0
    %p40 = por %p38, %p39
    %p41 = scmp.ne.s32.totalorder %s33, %s35
    %p42 = scmp.eq.s32.totalorder %s18, 1
    %p43 = por %p41, %p42
    %p44 = scmp.ne.s32.totalorder %s35, %s36
    %p45 = scmp.eq.s32.totalorder %s18, 0
    %p46 = por %p44, %p45
    %p47 = scmp.ne.s32.totalorder %s35, %s36
    %p48 = scmp.eq.s32.totalorder %s19, 1
    %p49 = por %p47, %p48
    %p51 = scmp.ne.s32.totalorder %s36, %s50
    %p52 = scmp.eq.s32.totalorder %s19, 0
    %p53 = por %p51, %p52
    %s55 = sadd.s32 %s54, 1
    %p58 = scmp.eq.s32.totalorder %s13, 1
    %p59 = scmp.ne.s32.totalorder %s54, %s56
    %p60 = scmp.eq.s32.totalorder %s13, 0
    %p61 = por %p59, %p60
    %p62 = scmp.ne.s32.totalorder %s54, %s56
    %p63 = scmp.eq.s32.totalorder %s18, 1
    %p64 = por %p62, %p63
    %p65 = scmp.ne.s32.totalorder %s56, %s57
    %p66 = scmp.eq.s32.totalorder %s18, 0
    %p67 = por %p65, %p66
    %p68 = scmp.ne.s32.totalorder %s56, %s57
    %p69 = scmp.eq.s32.totalorder %s19, 1
    %p70 = por %p68, %p69
    %p72 = scmp.ne.s32.totalorder %s57, %s71
    %p73 = scmp.eq.s32.totalorder %s19, 0
    %p74 = por %p72, %p73
    %s76 = sadd.s32 %s75, 1
    %p79 = scmp.eq.s32.totalorder %s13, 1
    %p80 = scmp.ne.s32.totalorder %s75, %s77
    %p81 = scmp.eq.s32.totalorder %s13, 0
    %p82 = por %p80, %p81
    %p83 = scmp.ne.s32.totalorder %s75, %s77
    %p84 = scmp.eq.s32.totalorder %s18, 1
    %p85 = por %p83, %p84
    %p86 = scmp.ne.s32.totalorder %s77, %s78
    %p87 = scmp.eq.s32.totalorder %s18, 0
    %p88 = por %p86, %p87
    %p89 = scmp.ne.s32.totalorder %s77, %s78
    %p90 = scmp.eq.s32.totalorder %s19, 1
    %p91 = por %p89, %p90
    %p93 = scmp.ne.s32.totalorder %s78, %s92
    %p94 = scmp.eq.s32.totalorder %s19, 0
    %p95 = por %p93, %p94
    %s96 = ssub.s32 %s20, %s32
    %s97 = ssub.s32 %s21, %s28
    %s98 = sor.u32 %s96, %s97
    %p99 = scmp.eq.s32.totalorder %s98, 0
    %s101 = sadd.s32 %s100, 1
    %s102 = scalar_select %p99, %s100, %s101
    %p105 = pneg %p99
    %p106 = scmp.eq.s32.totalorder %s13, 1
    %p107 = por %p105, %p106
    %p108 = scmp.ne.s32.totalorder %s100, %s103
    %p109 = scmp.eq.s32.totalorder %s13, 0
    %p110 = por %p108, %p109
    %p111 = scmp.ne.s32.totalorder %s100, %s103
    %p112 = scmp.eq.s32.totalorder %s18, 1
    %p113 = por %p111, %p112
    %p114 = scmp.ne.s32.totalorder %s103, %s104
    %p115 = scmp.eq.s32.totalorder %s18, 0
    %p116 = por %p114, %p115
    %p117 = scmp.ne.s32.totalorder %s103, %s104
    %p118 = scmp.eq.s32.totalorder %s19, 1
    %p119 = por %p117, %p118
    %p121 = scmp.ne.s32.totalorder %s104, %s120
    %p122 = scmp.eq.s32.totalorder %s19, 0
    %p123 = por %p121, %p122
    %s124 = ssub.s32 %s20, %s32
    %s125 = ssub.s32 %s21, %s28
    %s126 = sor.u32 %s124, %s125
    %p127 = scmp.eq.s32.totalorder %s126, 0
    %s129 = sadd.s32 %s128, 1
    %s130 = scalar_select %p127, %s128, %s129
    %p133 = pneg %p127
    %p134 = scmp.eq.s32.totalorder %s13, 1
    %p135 = por %p133, %p134
    %p136 = scmp.ne.s32.totalorder %s128, %s131
    %p137 = scmp.eq.s32.totalorder %s13, 0
    %p138 = por %p136, %p137
    %p139 = scmp.ne.s32.totalorder %s128, %s131
    %p140 = scmp.eq.s32.totalorder %s18, 1
    %p141 = por %p139, %p140
    %p142 = scmp.ne.s32.totalorder %s131, %s132
    %p143 = scmp.eq.s32.totalorder %s18, 0
    %p144 = por %p142, %p143
    %p145 = scmp.ne.s32.totalorder %s131, %s132
    %p146 = scmp.eq.s32.totalorder %s19, 1
    %p147 = por %p145, %p146
    %p149 = scmp.ne.s32.totalorder %s132, %s148
    %p150 = scmp.eq.s32.totalorder %s19, 0
    %p151 = por %p149, %p150
    %s152 = ssub.s32 %s20, %s32
    %p153 = scmp.eq.s32.totalorder %s152, 0
    %s155 = sadd.s32 %s154, 1
    %s156 = scalar_select %p153, %s154, %s155
    %p159 = pneg %p153
    %p160 = scmp.eq.s32.totalorder %s13, 1
    %p161 = por %p159, %p160
    %p162 = scmp.ne.s32.totalorder %s154, %s157
    %p163 = scmp.eq.s32.totalorder %s13, 0
    %p164 = por %p162, %p163
    %p165 = scmp.ne.s32.totalorder %s154, %s157
    %p166 = scmp.eq.s32.totalorder %s18, 1
    %p167 = por %p165, %p166
    %p168 = scmp.ne.s32.totalorder %s157, %s158
    %p169 = scmp.eq.s32.totalorder %s18, 0
    %p170 = por %p168, %p169
    %p171 = scmp.ne.s32.totalorder %s157, %s158
    %p172 = scmp.eq.s32.totalorder %s19, 1
    %p173 = por %p171, %p172
    %p175 = scmp.ne.s32.totalorder %s158, %s174
    %p176 = scmp.eq.s32.totalorder %s19, 0
    %p177 = por %p175, %p176
    %s178 = ssub.s32 %s20, %s32
    %p179 = scmp.eq.s32.totalorder %s178, 0
    %s181 = sadd.s32 %s180, 1
    %s182 = scalar_select %p179, %s180, %s181
    %p185 = pneg %p179
    %p186 = scmp.eq.s32.totalorder %s13, 1
    %p187 = por %p185, %p186
    %p188 = scmp.ne.s32.totalorder %s180, %s183
    %p189 = scmp.eq.s32.totalorder %s13, 0
    %p190 = por %p188, %p189
    %p191 = scmp.ne.s32.totalorder %s180, %s183
    %p192 = scmp.eq.s32.totalorder %s18, 1
    %p193 = por %p191, %p192
    %p194 = scmp.ne.s32.totalorder %s183, %s184
    %p195 = scmp.eq.s32.totalorder %s18, 0
    %p196 = por %p194, %p195
    %p197 = scmp.ne.s32.totalorder %s183, %s184
    %p198 = scmp.eq.s32.totalorder %s19, 1
    %p199 = por %p197, %p198
    %p201 = scmp.ne.s32.totalorder %s184, %s200
    %p202 = scmp.eq.s32.totalorder %s19, 0
    %p203 = por %p201, %p202
    %p204 = scmp.le.s32.totalorder 1, %s13
    %p205 = scmp.lt.s32.totalorder %s13, 3
    %p206 = pnand %p204, %p205
    %p207 = pneg %p206
    // Predicated region
    $region9: #{stack_encoder.6} parent=5 // pred_check
      _
    $region10: #{stack_encoder.6} parent=5 // pred_check_branch
      %209 = sbr.rel (%p206) target = $region12
    $region11: #{stack_encoder.6} parent=5 // pred_region
      %s210 = ssub.s32 %s13, 1
      // Predicated region
      $region13: #{stack_encoder.6} parent=11 // pred_check
        %p211 = pneg %p46
      $region14: #{stack_encoder.6} parent=11 // pred_check_branch
        %213 = sbr.rel (%p211) target = $region16
      $region15: #{stack_encoder.6} parent=11 // pred_region
        _
      $region16: #{stack_encoder.6} parent=11 // pred_fallthru
        _
      // Predicated region
      $region17: #{stack_encoder.6} parent=11 // pred_check
        %p214 = pneg %p67
      $region18: #{stack_encoder.6} parent=11 // pred_check_branch
        %216 = sbr.rel (%p214) target = $region20
      $region19: #{stack_encoder.6} parent=11 // pred_region
        _
      $region20: #{stack_encoder.6} parent=11 // pred_fallthru
        _
      // Predicated region
      $region21: #{stack_encoder.6} parent=11 // pred_check
        %p217 = pneg %p88
      $region22: #{stack_encoder.6} parent=11 // pred_check_branch
        %219 = sbr.rel (%p217) target = $region24
      $region23: #{stack_encoder.6} parent=11 // pred_region
        _
      $region24: #{stack_encoder.6} parent=11 // pred_fallthru
        _
    $region12: #{stack_encoder.6} parent=5 // pred_fallthru
      _
    %p220 = scmp.lt.s32.totalorder %s13, 2
    // Predicated region
    $region25: #{stack_encoder.6} parent=5 // pred_check
      %p221 = pneg %p220
    $region26: #{stack_encoder.6} parent=5 // pred_check_branch
      %223 = sbr.rel (%p221) target = $region28
    $region27: #{stack_encoder.6} parent=5 // pred_region
      // Predicated region
      $region29: #{stack_encoder.6} parent=27 // pred_check
        %p224 = pneg %p110
      $region30: #{stack_encoder.6} parent=27 // pred_check_branch
        %226 = sbr.rel (%p224) target = $region32
      $region31: #{stack_encoder.6} parent=27 // pred_region
        %p227 = scmp.lt.s32.totalorder %s20, 1
        %s228 = scalar_select %p227, %s20, 1
        %p229 = scmp.lt.s32.totalorder %s21, 0
        %s230 = scalar_select %p229, %s21, 0
        %s231 = smul.addr %s228, 32
        %s232 = sadd.s32 %s230, %s231
        %s233 = smul.addr %s232, 4
        %s234 = scalar_lea.vmem %s3, %s233
      $region32: #{stack_encoder.6} parent=27 // pred_fallthru
        _
    $region28: #{stack_encoder.6} parent=5 // pred_fallthru
      _
    %p235 = scmp.le.s32.totalorder 1, %s13
    %p236 = scmp.lt.s32.totalorder %s13, 3
    %p237 = pnand %p235, %p236
    %p238 = pneg %p237
    // Predicated region
    $region33: #{stack_encoder.6} parent=5 // pred_check
      _
    $region34: #{stack_encoder.6} parent=5 // pred_check_branch
      %240 = sbr.rel (%p237) target = $region36
    $region35: #{stack_encoder.6} parent=5 // pred_region
      %s241 = ssub.s32 %s13, 1
      %p242 = pneg %p46
      %p243 = pneg %p43
      %p244 = pneg %p67
      %p245 = pneg %p64
      %p246 = pneg %p88
      %p247 = pneg %p85
      %p248 = scmp.lt.s32.totalorder %s22, 1
      %s249 = scalar_select %p248, %s22, 1
      %p250 = scmp.lt.s32.totalorder %s23, 0
      %s251 = scalar_select %p250, %s23, 0
      %s252 = smul.addr %s249, 32
      %s253 = sadd.s32 %s251, %s252
      %s254 = smul.addr %s253, 4
      %s255 = scalar_lea.vmem %s3, %s254
      %p256 = pneg %p116
      %p257 = pneg %p113
      %p258 = pneg %p144
      %p259 = pneg %p141
      %p260 = scmp.lt.s32.totalorder %s22, 1
      %s261 = scalar_select %p260, %s22, 1
      %p262 = scmp.lt.s32.totalorder %s23, 0
      %s263 = scalar_select %p262, %s23, 0
      %s264 = sadd.s32 %s263, %s261
      %s265 = smul.addr %s264, 8
      %s266 = scalar_lea.vmem %s4, %s265
      %p267 = pneg %p170
      %p268 = pneg %p167
      %p269 = scmp.lt.s32.totalorder %s22, 1
      %s270 = scalar_select %p269, %s22, 1
      %s271 = smul.addr %s270, 8
      %s272 = scalar_lea.vmem %s5, %s271
      %p273 = pneg %p196
      %p274 = pneg %p193
      %p275 = scmp.lt.s32.totalorder %s22, 1
      %s276 = scalar_select %p275, %s22, 1
      %s277 = smul.addr %s276, 8
      %s278 = scalar_lea.vmem %s6, %s277
      %p279 = scmp.lt.s32.totalorder %s22, 1
      %s280 = scalar_select %p279, %s22, 1
      %p281 = scmp.lt.s32.totalorder %s23, 0
      %s282 = scalar_select %p281, %s23, 0
      %s283 = smul.addr %s280, 32
      %s284 = sadd.s32 %s282, %s283
      %s285 = smul.addr %s284, 4
      %s286 = scalar_lea.vmem %s3, %s285
      %p287 = scmp.lt.s32.totalorder %s22, 1
      %s288 = scalar_select %p287, %s22, 1
      %p289 = scmp.lt.s32.totalorder %s23, 0
      %s290 = scalar_select %p289, %s23, 0
      %s291 = sadd.s32 %s290, %s288
      %s292 = smul.addr %s291, 8
      %s293 = scalar_lea.vmem %s4, %s292
      %p294 = scmp.lt.s32.totalorder %s22, 1
      %s295 = scalar_select %p294, %s22, 1
      %s296 = smul.addr %s295, 8
      %s297 = scalar_lea.vmem %s5, %s296
      %p298 = scmp.lt.s32.totalorder %s22, 1
      %s299 = scalar_select %p298, %s22, 1
      %s300 = smul.addr %s299, 8
      %s301 = scalar_lea.vmem %s6, %s300
      %p302 = scmp.eq.s32.totalorder %s23, 0
      // Predicated region
      $region37: #{stack_encoder.6} parent=35 // pred_check
        %p303 = pneg %p302
      $region38: #{stack_encoder.6} parent=35 // pred_check_branch
        %305 = sbr.rel (%p303) target = $region40
      $region39: #{stack_encoder.6} parent=35 // pred_region
        %vm306 = vcmask 7168
        %307 = vst.msk [vmem:[#allocation2] sm:$0xff] %vm306, 0.0
        %308 = vst.msk [vmem:[#allocation3] sm:$0xff] %vm306, 0.0
      $region40: #{stack_encoder.6} parent=35 // pred_fallthru
        _
      %v309 = vld [vmem:[%s0] sm:$0xff]
      %v310 = vld [vmem:[%s286] sm:$0xf]
      %v311 = vld [vmem:[%s286 + $0x4] sm:$0xf]
      %v312 = vld [vmem:[%s286 + $0x8] sm:$0xf]
      %v313 = vld [vmem:[%s286 + $0xc] sm:$0xf]
      %v314 = vld [vmem:[%s286 + $0x10] sm:$0xf]
      %v315 = vld [vmem:[%s286 + $0x14] sm:$0xf]
      %v316 = vld [vmem:[%s286 + $0x18] sm:$0xf]
      %v317 = vld [vmem:[%s286 + $0x1c] sm:$0xf]
      %v318 = vld [vmem:[%s286 + $0x20] sm:$0xf]
      %v319 = vld [vmem:[%s286 + $0x24] sm:$0xf]
      %v320 = vld [vmem:[%s286 + $0x28] sm:$0xf]
      %v321 = vld [vmem:[%s286 + $0x2c] sm:$0xf]
      %v322 = vld [vmem:[%s286 + $0x30] sm:$0xf]
      %v323 = vld [vmem:[%s286 + $0x34] sm:$0xf]
      %v324 = vld [vmem:[%s286 + $0x38] sm:$0xf]
      %v325 = vld [vmem:[%s286 + $0x3c] sm:$0xf]
      %v326 = vld [vmem:[%s286 + $0x40] sm:$0xf]
      %v327 = vld [vmem:[%s286 + $0x44] sm:$0xf]
      %v328 = vld [vmem:[%s286 + $0x48] sm:$0xf]
      %v329 = vld [vmem:[%s286 + $0x4c] sm:$0xf]
      %v330 = vld [vmem:[%s286 + $0x50] sm:$0xf]
      %v331 = vld [vmem:[%s286 + $0x54] sm:$0xf]
      %v332 = vld [vmem:[%s286 + $0x58] sm:$0xf]
      %v333 = vld [vmem:[%s286 + $0x5c] sm:$0xf]
      %v334 = vld [vmem:[%s286 + $0x60] sm:$0xf]
      %v335 = vld [vmem:[%s286 + $0x64] sm:$0xf]
      %v336 = vld [vmem:[%s286 + $0x68] sm:$0xf]
      %v337 = vld [vmem:[%s286 + $0x6c] sm:$0xf]
      %v338 = vld [vmem:[%s286 + $0x70] sm:$0xf]
      %v339 = vld [vmem:[%s286 + $0x74] sm:$0xf]
      %v340 = vld [vmem:[%s286 + $0x78] sm:$0xf]
      %v341 = vld [vmem:[%s286 + $0x7c] sm:$0xf]
      %v343 = vunpack.c.l.b16 %v309
      %v344 = vunpack.c.h.b16 %v309
      %v345 = vpack.c.b16 %v343, %v343
      %v346 = vpack.c.b16 %v344, %v344
      %v381 = vunpack.c.l.b16 %v310
      %v382 = vunpack.c.l.b16 %v311
      %v383 = vunpack.c.l.b16 %v312
      %v384 = vunpack.c.l.b16 %v313
      %v385 = vunpack.c.l.b16 %v314
      %v386 = vunpack.c.l.b16 %v315
      %v387 = vunpack.c.l.b16 %v316
      %v388 = vunpack.c.l.b16 %v317
      %v389 = vunpack.c.l.b16 %v318
      %v390 = vunpack.c.l.b16 %v319
      %v391 = vunpack.c.l.b16 %v320
      %v392 = vunpack.c.l.b16 %v321
      %v393 = vunpack.c.l.b16 %v322
      %v394 = vunpack.c.l.b16 %v323
      %v395 = vunpack.c.l.b16 %v324
      %v396 = vunpack.c.l.b16 %v325
      %v397 = vunpack.c.l.b16 %v326
      %v398 = vunpack.c.l.b16 %v327
      %v399 = vunpack.c.l.b16 %v328
      %v400 = vunpack.c.l.b16 %v329
      %v401 = vunpack.c.l.b16 %v330
      %v402 = vunpack.c.l.b16 %v331
      %v403 = vunpack.c.l.b16 %v332
      %v404 = vunpack.c.l.b16 %v333
      %v405 = vunpack.c.l.b16 %v334
      %v406 = vunpack.c.l.b16 %v335
      %v407 = vunpack.c.l.b16 %v336
      %v408 = vunpack.c.l.b16 %v337
      %v409 = vunpack.c.l.b16 %v338
      %v410 = vunpack.c.l.b16 %v339
      %v411 = vunpack.c.l.b16 %v340
      %v412 = vunpack.c.l.b16 %v341
      %v413 = vpack.c.b16 %v382, %v381
      %v414 = vpack.c.b16 %v384, %v383
      %v415 = vpack.c.b16 %v386, %v385
      %v416 = vpack.c.b16 %v388, %v387
      %v417 = vpack.c.b16 %v390, %v389
      %v418 = vpack.c.b16 %v392, %v391
      %v419 = vpack.c.b16 %v394, %v393
      %v420 = vpack.c.b16 %v396, %v395
      %v421 = vpack.c.b16 %v398, %v397
      %v422 = vpack.c.b16 %v400, %v399
      %v423 = vpack.c.b16 %v402, %v401
      %v424 = vpack.c.b16 %v404, %v403
      %v425 = vpack.c.b16 %v406, %v405
      %v426 = vpack.c.b16 %v408, %v407
      %v427 = vpack.c.b16 %v410, %v409
      %v428 = vpack.c.b16 %v412, %v411
      %445 = vmatpush.bf16.msra.mxu0 %v420
      %446 = vmatpush.bf16.msra.mxu0 %v419
      %447 = vmatpush.bf16.msra.mxu0 %v418
      %448 = vmatpush.bf16.msra.mxu0 %v417
      %449 = vmatpush.bf16.msra.mxu0 %v416
      %450 = vmatpush.bf16.msra.mxu0 %v415
      %451 = vmatpush.bf16.msra.mxu0 %v414
      %452 = vmatpush.bf16.msra.mxu0 %v413
      %453 = vmatmul.bf16.gmra.mxu0 %v345
      %v454 = vpop.f32.mrf.mxu0
      %v455 = vadd.f32 0.0, %v454
      %v456 = vpop.f32.mrf.mxu0
      %457 = vdwg.mxu0
      %458 = vmatpush.bf16.msra.mxu0 %v428
      %459 = vmatpush.bf16.msra.mxu0 %v427
      %460 = vmatpush.bf16.msra.mxu0 %v426
      %461 = vmatpush.bf16.msra.mxu0 %v425
      %462 = vmatpush.bf16.msra.mxu0 %v424
      %463 = vmatpush.bf16.msra.mxu0 %v423
      %464 = vmatpush.bf16.msra.mxu0 %v422
      %465 = vmatpush.bf16.msra.mxu0 %v421
      %466 = vmatmul.bf16.gmra.mxu0 %v346
      %v467 = vpop.f32.mrf.mxu0
      %v468 = vadd.f32 %v455, %v467
      %v469 = vpop.f32.mrf.mxu0
      %470 = vdwg.mxu0
      %471 = vst [vmem:[%s293] sm:$0xff] %v468
      %v472 = vld [vmem:[#allocation2] sm:$0xff]
      %473 = vadd.xlane.f32.xlu0 %v468
      %v474 = vpop.xlane.xlu0 %473
      %v475 = vadd.f32 %v472, %v474
      %vm476 = vcmask 7168
      %477 = vst.msk [vmem:[#allocation2] sm:$0xff] %vm476, %v475
      %v478 = vld [vmem:[#allocation3] sm:$0xff]
      %v479 = vmul.f32 %v468, %v468
      %480 = vadd.xlane.f32.xlu0 %v479
      %v481 = vpop.xlane.xlu0 %480
      %v482 = vadd.f32 %v478, %v481
      %483 = vst.msk [vmem:[#allocation3] sm:$0xff] %vm476, %v482
      // Predicated region
      $region41: #{stack_encoder.6} parent=35 // pred_check
        %p484 = pneg %p302
      $region42: #{stack_encoder.6} parent=35 // pred_check_branch
        %486 = sbr.rel (%p484) target = $region44
      $region43: #{stack_encoder.6} parent=35 // pred_region
        %v487 = vld [vmem:[#allocation2] sm:$0xff]
        %v488 = vmul.f32 %v487, 0.015625
        %v489 = vld [vmem:[#allocation3] sm:$0xff]
        %v490 = vmul.f32 %v489, 0.015625
        %v491 = vmul.f32 %v488, %v488
        %v492 = vsub.f32 %v490, %v491
        %v493 = vmax.f32 %v492, 0.0
        %v494 = vadd.f32 %v493, 1e-05
        %v495 = vrsqrt.pop %v494
        %v496 = vmul.f32 %v495, %v494
        %v497 = vmul.f32 %v496, %v495
        %v498 = vmul.f32 0.5, %v497
        %v499 = vsub.f32 1.5, %v498
        %v500 = vmul.f32 %v495, %v499
        %vm501 = vweird.f32 %v494
        %vm502 = vweird.f32 %v495
        %vm503 = vmor %vm501, %vm502
        %v504 = vsel %vm503, %v495, %v500
        %v505 = vld [vmem:[%s1] sm:$0xff]
        %v506 = vmul.f32 %v505, %v504
        %507 = vst.msk [vmem:[%s297] sm:$0xff] %vm476, %v506
        %v508 = vld [vmem:[%s2] sm:$0xff]
        %v509 = vmul.f32 %v488, %v506
        %v510 = vsub.f32 %v508, %v509
        %511 = vst.msk [vmem:[%s301] sm:$0xff] %vm476, %v510
      $region44: #{stack_encoder.6} parent=35 // pred_fallthru
        _
      %p512 = scmp.lt.s32.totalorder %s22, 1
      %s513 = scalar_select %p512, %s22, 1
      %p514 = scmp.lt.s32.totalorder %s23, 0
      %s515 = scalar_select %p514, %s23, 0
      %s516 = sadd.s32 %s515, %s513
      %s517 = smul.addr %s516, 8
      %s518 = scalar_lea.vmem %s4, %s517
      %p519 = scmp.lt.s32.totalorder %s22, 1
      %s520 = scalar_select %p519, %s22, 1
      %s521 = smul.addr %s520, 8
      %s522 = scalar_lea.vmem %s5, %s521
      %p523 = scmp.lt.s32.totalorder %s22, 1
      %s524 = scalar_select %p523, %s22, 1
      %s525 = smul.addr %s524, 8
      %s526 = scalar_lea.vmem %s6, %s525
      // Predicated region
      $region45: #{stack_encoder.6} parent=35 // pred_check
        %p527 = pneg %p141
      $region46: #{stack_encoder.6} parent=35 // pred_check_branch
        %529 = sbr.rel (%p527) target = $region48
      $region47: #{stack_encoder.6} parent=35 // pred_region
        _
      $region48: #{stack_encoder.6} parent=35 // pred_fallthru
        _
      // Predicated region
      $region49: #{stack_encoder.6} parent=35 // pred_check
        %p530 = pneg %p167
      $region50: #{stack_encoder.6} parent=35 // pred_check_branch
        %532 = sbr.rel (%p530) target = $region52
      $region51: #{stack_encoder.6} parent=35 // pred_region
        _
      $region52: #{stack_encoder.6} parent=35 // pred_fallthru
        _
      // Predicated region
      $region53: #{stack_encoder.6} parent=35 // pred_check
        %p533 = pneg %p193
      $region54: #{stack_encoder.6} parent=35 // pred_check_branch
        %535 = sbr.rel (%p533) target = $region56
      $region55: #{stack_encoder.6} parent=35 // pred_region
        _
      $region56: #{stack_encoder.6} parent=35 // pred_fallthru
        _
    $region36: #{stack_encoder.6} parent=5 // pred_fallthru
      _
    %p536 = scmp.le.s32.totalorder 2, %s13
    // Predicated region
    $region57: #{stack_encoder.6} parent=5 // pred_check
      %p537 = pneg %p536
    $region58: #{stack_encoder.6} parent=5 // pred_check_branch
      %539 = sbr.rel (%p537) target = $region60
    $region59: #{stack_encoder.6} parent=5 // pred_region
      %s540 = ssub.s32 %s13, 2
      // Predicated region
      $region61: #{stack_encoder.6} parent=59 // pred_check
        %p541 = pneg %p147
      $region62: #{stack_encoder.6} parent=59 // pred_check_branch
        %543 = sbr.rel (%p541) target = $region64
      $region63: #{stack_encoder.6} parent=59 // pred_region
        %p544 = scmp.lt.s32.totalorder %s24, 1
        %s545 = scalar_select %p544, %s24, 1
        %p546 = scmp.lt.s32.totalorder %s25, 0
        %s547 = scalar_select %p546, %s25, 0
        %s548 = sadd.s32 %s547, %s545
        %s549 = smul.addr %s548, 8
        %s550 = scalar_lea.vmem %s4, %s549
      $region64: #{stack_encoder.6} parent=59 // pred_fallthru
        _
      // Predicated region
      $region65: #{stack_encoder.6} parent=59 // pred_check
        %p551 = pneg %p173
      $region66: #{stack_encoder.6} parent=59 // pred_check_branch
        %553 = sbr.rel (%p551) target = $region68
      $region67: #{stack_encoder.6} parent=59 // pred_region
        %p554 = scmp.lt.s32.totalorder %s24, 1
        %s555 = scalar_select %p554, %s24, 1
        %s556 = smul.addr %s555, 8
        %s557 = scalar_lea.vmem %s5, %s556
      $region68: #{stack_encoder.6} parent=59 // pred_fallthru
        _
      // Predicated region
      $region69: #{stack_encoder.6} parent=59 // pred_check
        %p558 = pneg %p199
      $region70: #{stack_encoder.6} parent=59 // pred_check_branch
        %560 = sbr.rel (%p558) target = $region72
      $region71: #{stack_encoder.6} parent=59 // pred_region
        %p561 = scmp.lt.s32.totalorder %s24, 1
        %s562 = scalar_select %p561, %s24, 1
        %s563 = smul.addr %s562, 8
        %s564 = scalar_lea.vmem %s6, %s563
      $region72: #{stack_encoder.6} parent=59 // pred_fallthru
        _
    $region60: #{stack_encoder.6} parent=5 // pred_fallthru
      _
  $region6: #{stack_encoder.6} parent=0 // loop_footer
    %s17 = sadd.s32 1, %s13
  $region7: #{stack_encoder.6} parent=0 // loop_footer_branch
    %12 = sbr.rel target = $region3
  $region8: #{stack_encoder.6} parent=0 // loop_exit
    _

</llo_original>
